<compile_context>
chip_gen: v7x
topology: tpu7x:2x2x1
jax: 0.10.0
libtpu: 0.0.40
codegen_flags: <defaults>
</compile_context>

<pallas_src>
import jax
import jax.numpy as jnp
from jax import lax
from jax.experimental import pallas as pl
from jax.experimental.pallas import tpu as pltpu

NUM_BOND_TYPE = 6
NUM_BOND_DIRECTION = 3
NUM_ATOM_TYPE = 120
NUM_CHIRALITY_TAG = 3
BN_EPS = 1e-5

LANE = 128


def _round_up(x, m):
    return (x + m - 1) // m * m


def _vmem_capacity_bytes():
    try:
        info = pltpu.get_tpu_info()
        cap = int(getattr(info, "vmem_capacity_bytes", 0))
        if cap > 0:
            return cap
    except Exception:
        pass
    return 64 * 1024 * 1024     # conservative default (v7x per-TC VMEM)


# ---------------------------------------------------------------------------
# Fused Pallas kernel: all GIN layers + BatchNorm(+ReLU) + global mean pool
# ---------------------------------------------------------------------------
def _make_kernel(*, n_real, ec_rows, tm, n_tiles, num_layers, adj_resident):
    inv_n = 1.0 / float(n_real)
    last_layer = num_layers - 1

    def kernel(h0hi_hbm, h0lo_hbm, adj_in, ec_ref, pool_ref,
               w1_ref, b1_ref, w2_ref, b2_ref, gamma_ref, beta_ref,
               out_ref, *scratch):
        if adj_resident:
            (adj_vmem, hhi_ref, hlo_ref, h2_ref, pacc_ref, stat_ref,
             sem_ref) = scratch
        else:
            (hhi_ref, hlo_ref, h2_ref, pacc_ref, stat_ref, sem_ref) = scratch

        l = pl.program_id(0)            # layer index (outer, sequential)
        i = pl.program_id(1)            # node-row tile index (inner, sequential)

        # ---- one-time prologue: manual DMA of the single-fetch inputs into
        # single-buffered VMEM scratch (no BlockSpec double buffering).
        @pl.when((l == 0) & (i == 0))
        def _():
            cp_hi = pltpu.make_async_copy(h0hi_hbm, hhi_ref, sem_ref.at[0])
            cp_lo = pltpu.make_async_copy(h0lo_hbm, hlo_ref, sem_ref.at[1])
            cp_hi.start()
            cp_lo.start()
            if adj_resident:
                cp_adj = pltpu.make_async_copy(adj_in, adj_vmem, sem_ref.at[2])
                cp_adj.start()
                cp_adj.wait()
            cp_hi.wait()
            cp_lo.wait()

        # ---- per-layer init ---------------------------------------------
        @pl.when(i == 0)
        def _():
            stat_ref[...] = jnp.zeros_like(stat_ref)

        @pl.when((l == last_layer) & (i == 0))
        def _():
            pacc_ref[...] = jnp.zeros_like(pacc_ref)

        # ---- row tile: bf16 aggregation (hi/lo split keeps ~f32 accuracy) -
        row0 = pl.multiple_of(i * tm, tm)
        if adj_resident:
            adj_t = adj_vmem[pl.ds(row0, tm), :]          # (tm, n_pad) bf16
        else:
            adj_t = adj_in[...]                           # (tm, n_pad) bf16
        aggr = jnp.dot(adj_t, hhi_ref[...], preferred_element_type=jnp.float32)
        aggr = aggr + jnp.dot(adj_t, hlo_ref[...],
                              preferred_element_type=jnp.float32)

        # GIN MLP.  (A@h + ec) @ W1 == (A@h)@W1 + ec@W1[:ec_rows] exactly,
        # because ec's padded columns hit zero-padded rows of W1 -> the edge
        # contributions stay narrow in HBM.
        w1 = w1_ref[0]
        h1 = jnp.dot(aggr, w1, preferred_element_type=jnp.float32)
        h1 = h1 + jnp.dot(ec_ref[0], w1[:ec_rows, :],
                          preferred_element_type=jnp.float32)
        h1 = jnp.maximum(h1 + b1_ref[0], 0.0)
        h2 = jnp.dot(h1, w2_ref[0], preferred_element_type=jnp.float32) + b2_ref[0]

        # BatchNorm statistics over REAL rows only (padding only exists in the
        # last row tile); merged single (2, d_pad) accumulator update.
        rows = lax.broadcasted_iota(jnp.int32, (tm, 1), 0) + row0
        wgt = jnp.where(rows < n_real, inv_n, 0.0).astype(jnp.float32)
        s0 = jnp.sum(h2 * wgt, axis=0, keepdims=True)
        s1 = jnp.sum(h2 * h2 * wgt, axis=0, keepdims=True)
        stat_ref[...] = stat_ref[...] + jnp.concatenate([s0, s1], axis=0)

        # Stash the pre-BN tile; normalization needs the whole layer's stats.
        h2_ref[pl.ds(row0, tm), :] = h2

        # Last layer: fold global_mean_pool into the tile loop.  BN is a
        # per-feature affine, and the pool rows sum to 1 for real graphs, so
        # pool @ BN(h2) == (pool @ h2) * scale + shift, applied in finalize.
        @pl.when(l == last_layer)
        def _():
            pacc_ref[...] = pacc_ref[...] + jnp.dot(
                pool_ref[...], h2, preferred_element_type=jnp.float32)

        # ---- layer finalize ------------------------------------------------
        @pl.when(i == n_tiles - 1)
        def _():
            stats = stat_ref[...]
            mean = stats[0:1, :]
            var = jnp.maximum(stats[1:2, :] - mean * mean, 0.0)
            rstd = lax.rsqrt(var + BN_EPS)
            scale = rstd * gamma_ref[0]
            shift = beta_ref[0] - mean * scale

            @pl.when(l != last_layer)
            def _():
                # Chunked BN + ReLU + bf16 hi/lo re-split of h for the next
                # layer (bounds temporaries and vector-store pressure).
                @pl.loop(0, n_tiles)
                def _(c):
                    r0 = pl.multiple_of(c * tm, tm)
                    hn = jnp.maximum(
                        h2_ref[pl.ds(r0, tm), :] * scale + shift, 0.0)
                    hi = hn.astype(jnp.bfloat16)
                    lo = (hn - hi.astype(jnp.float32)).astype(jnp.bfloat16)
                    hhi_ref[pl.ds(r0, tm), :] = hi
                    hlo_ref[pl.ds(r0, tm), :] = lo

            @pl.when(l == last_layer)
            def _():
                out_ref[...] = pacc_ref[...] * scale + shift

    return kernel


def fused_gnn_pallas(h0_hi, h0_lo, adj, ec, pool_mat,
                     w1, b1, w2, b2, gamma, beta,
                     *, n_real, tm, adj_resident, vmem_limit_bytes):
    num_layers = ec.shape[0]
    n_pad, d_pad = h0_hi.shape
    ec_rows = ec.shape[2]
    d2_pad = w1.shape[2]
    g_pad = pool_mat.shape[0]
    n_tiles = n_pad // tm

    kernel = _make_kernel(n_real=n_real, ec_rows=ec_rows, tm=tm,
                          n_tiles=n_tiles, num_layers=num_layers,
                          adj_resident=adj_resident)

    any_spec = pl.BlockSpec(memory_space=pl.ANY)
    adj_spec = (any_spec if adj_resident
                else pl.BlockSpec((tm, n_pad), lambda l, i: (i, 0)))

    in_specs = [
        any_spec,                                                # h0 hi (bf16)
        any_spec,                                                # h0 lo (bf16)
        adj_spec,                                                # adjacency
        pl.BlockSpec((1, tm, ec_rows), lambda l, i: (l, i, 0)),  # edge contrib
        pl.BlockSpec((g_pad, tm), lambda l, i: (0, i)),          # pool column tile
        pl.BlockSpec((1, d_pad, d2_pad), lambda l, i: (l, 0, 0)),  # w1
        pl.BlockSpec((1, 1, d2_pad), lambda l, i: (l, 0, 0)),      # b1
        pl.BlockSpec((1, d2_pad, d_pad), lambda l, i: (l, 0, 0)),  # w2
        pl.BlockSpec((1, 1, d_pad), lambda l, i: (l, 0, 0)),       # b2
        pl.BlockSpec((1, 1, d_pad), lambda l, i: (l, 0, 0)),       # gamma
        pl.BlockSpec((1, 1, d_pad), lambda l, i: (l, 0, 0)),       # beta
    ]
    out_specs = pl.BlockSpec((g_pad, d_pad), lambda l, i: (0, 0))

    scratch_shapes = []
    if adj_resident:
        scratch_shapes.append(pltpu.VMEM((n_pad, n_pad), jnp.bfloat16))
    scratch_shapes += [
        pltpu.VMEM((n_pad, d_pad), jnp.bfloat16),   # h hi (layer input)
        pltpu.VMEM((n_pad, d_pad), jnp.bfloat16),   # h lo (layer input)
        pltpu.VMEM((n_pad, d_pad), jnp.float32),    # pre-BN stash
        pltpu.VMEM((g_pad, d_pad), jnp.float32),    # pooled partial sums
        pltpu.VMEM((2, d_pad), jnp.float32),        # BN E[x], E[x^2]
        pltpu.SemaphoreType.DMA((3,)),
    ]

    flops = (num_layers * (4 * n_pad * n_pad * d_pad            # hi+lo aggregation
                           + 2 * n_pad * d_pad * d2_pad
                           + 2 * n_pad * ec_rows * d2_pad
                           + 2 * n_pad * d2_pad * d_pad)
             + 2 * g_pad * n_pad * d_pad)
    adj_reads = 1 if adj_resident else num_layers
    bytes_accessed = (adj_reads * n_pad * n_pad * 2
                      + num_layers * n_pad * ec_rows * 4
                      + 2 * n_pad * d_pad * 2
                      + num_layers * g_pad * n_pad * 4
                      + num_layers * (d_pad * d2_pad + d2_pad * d_pad
                                      + 2 * d2_pad + 3 * d_pad) * 4
                      + g_pad * d_pad * 4)

    return pl.pallas_call(
        kernel,
        out_shape=jax.ShapeDtypeStruct((g_pad, d_pad), jnp.float32),
        grid_spec=pltpu.PrefetchScalarGridSpec(
            num_scalar_prefetch=0,
            grid=(num_layers, n_tiles),
            in_specs=in_specs,
            out_specs=out_specs,
            scratch_shapes=scratch_shapes),
        compiler_params=pltpu.CompilerParams(
            # Both grid axes carry cross-iteration state (h hi/lo scratch
            # across layers, BN/pool partial sums across row tiles).
            # TODO(synk): on v7x, shard the row-tile axis across the 2 TCs
            # (core_map + per-core BN partials + cross-core combine).
            dimension_semantics=("arbitrary", "arbitrary"),
            vmem_limit_bytes=int(vmem_limit_bytes)),
        cost_estimate=pl.CostEstimate(flops=int(flops), transcendentals=0,
                                      bytes_accessed=int(bytes_accessed)),
    )(h0_hi, h0_lo, adj, ec, pool_mat, w1, b1, w2, b2, gamma, beta)


# ---------------------------------------------------------------------------
# Parameter init (deterministic, synthetic)
# ---------------------------------------------------------------------------
def _xavier_uniform(key, shape):
    fan_in, fan_out = shape[0], shape[1]
    bound = (6.0 / (fan_in + fan_out)) ** 0.5
    return jax.random.uniform(key, shape, jnp.float32, -bound, bound)


def init_params(key, num_layer, emb_dim):
    keys = jax.random.split(key, 2 + num_layer)
    params = {
        "x_emb1": _xavier_uniform(keys[0], (NUM_ATOM_TYPE, emb_dim)),
        "x_emb2": _xavier_uniform(keys[1], (NUM_CHIRALITY_TAG, emb_dim)),
        "layers": [],
    }
    for l in range(num_layer):
        lk = jax.random.split(keys[2 + l], 6)
        lp = {
            "w1": _xavier_uniform(lk[0], (emb_dim, 2 * emb_dim)),
            "b1": jnp.zeros((1, 2 * emb_dim), jnp.float32),
            "w2": _xavier_uniform(lk[1], (2 * emb_dim, emb_dim)),
            "b2": jnp.zeros((1, emb_dim), jnp.float32),
            "edge_emb1": _xavier_uniform(lk[2], (NUM_BOND_TYPE, emb_dim)),
            "edge_emb2": _xavier_uniform(lk[3], (NUM_BOND_DIRECTION, emb_dim)),
            "gamma": jnp.ones((1, emb_dim), jnp.float32),
            "beta": jnp.zeros((1, emb_dim), jnp.float32),
        }
        params["layers"].append(lp)
    return params


# ---------------------------------------------------------------------------
# Forward pass (embedding/scatter glue in JAX, fused hot path in Pallas)
# ---------------------------------------------------------------------------
def gnn_graph_forward(params, x, edge_index, edge_attr, batch, num_graphs):
    n = x.shape[0]
    emb_dim = params["x_emb1"].shape[1]
    d_pad = _round_up(emb_dim, LANE)
    d2_pad = _round_up(2 * emb_dim, LANE)
    ec_rows = _round_up(emb_dim, 8)

    # Generation-gated tiling / VMEM budget (v5e/v6e: 128 MiB, v7x: 64 MiB).
    vmem_cap = _vmem_capacity_bytes()
    vmem_limit = vmem_cap * 3 // 4
    tm_max = 512 if vmem_cap >= 96 * 1024 * 1024 else 256

    if n <= tm_max:
        n_pad = _round_up(n, LANE)
        tm = n_pad
    else:
        n_pad = _round_up(n, tm_max)
        tm = tm_max
    g_pad = _round_up(max(num_graphs, 1), 8)

    # Keep the whole bf16 adjacency resident in VMEM across all layers when it
    # fits (cuts the dominant HBM stream by num_layers x); otherwise stream
    # (tm, n_pad) row tiles through the auto-pipelined BlockSpec.
    persistent = n_pad * d_pad * (2 + 2 + 4) + g_pad * d_pad * 4
    streamed = (2 * tm * n_pad * 2
                + 2 * (tm * ec_rows * 4 + g_pad * tm * 4)
                + 4 * (d_pad * d2_pad * 4 + d2_pad * d_pad * 4))
    adj_bytes = n_pad * n_pad * 2
    adj_resident = adj_bytes + persistent + streamed <= int(vmem_limit * 0.8)

    # Node embeddings, split into bf16 hi/lo so A@h runs on the fast bf16 MXU
    # path while keeping ~f32 accuracy (A@h == A@hi + A@lo).
    h0 = params["x_emb1"][x[:, 0]] + params["x_emb2"][x[:, 1]]
    h0_p = jnp.zeros((n_pad, d_pad), jnp.float32).at[:n, :emb_dim].set(h0)
    h0_hi = h0_p.astype(jnp.bfloat16)
    h0_lo = (h0_p - h0_hi.astype(jnp.float32)).astype(jnp.bfloat16)

    # add_self_loops + self-loop edge attr [4, 0] (glue).
    src = jnp.concatenate([edge_index[0], jnp.arange(n, dtype=edge_index.dtype)])
    dst = jnp.concatenate([edge_index[1], jnp.arange(n, dtype=edge_index.dtype)])
    self_attr = jnp.stack(
        [jnp.full((n,), 4, dtype=edge_attr.dtype),
         jnp.zeros((n,), dtype=edge_attr.dtype)], axis=1)
    ea = jnp.concatenate([edge_attr, self_attr], axis=0)

    # Dense (dst, src) adjacency with self loops.  bf16 is exact while the
    # per-pair edge multiplicity stays <= 256 (true for molecular graphs).
    # TODO(synk): for large sparse graphs replace the dense A@h with a CSR
    # gather + segment-sum kernel (scalar-prefetched row offsets).
    adj = (jnp.zeros((n_pad, n_pad), jnp.float32)
           .at[dst, src].add(1.0).astype(jnp.bfloat16))

    # Per-layer edge-embedding sums scattered to destinations; kept at the
    # narrow (non-128-padded) width -- the kernel folds them through W1.
    ec = []
    for lp in params["layers"]:
        ee = lp["edge_emb1"][ea[:, 0]] + lp["edge_emb2"][ea[:, 1]]
        c = jnp.zeros((n_pad, emb_dim), jnp.float32).at[dst].add(ee)
        if ec_rows != emb_dim:
            c = jnp.pad(c, ((0, 0), (0, ec_rows - emb_dim)))
        ec.append(c)
    ec = jnp.stack(ec, axis=0)

    # Stacked, lane-padded per-layer parameters (zero padding keeps the padded
    # feature columns identically zero through every layer).
    def pad2(a, rows, cols):
        return jnp.zeros((rows, cols), jnp.float32).at[:a.shape[0], :a.shape[1]].set(a)

    w1 = jnp.stack([pad2(lp["w1"], d_pad, d2_pad) for lp in params["layers"]])
    b1 = jnp.stack([pad2(lp["b1"], 1, d2_pad) for lp in params["layers"]])
    w2 = jnp.stack([pad2(lp["w2"], d2_pad, d_pad) for lp in params["layers"]])
    b2 = jnp.stack([pad2(lp["b2"], 1, d_pad) for lp in params["layers"]])
    gamma = jnp.stack([pad2(lp["gamma"], 1, d_pad) for lp in params["layers"]])
    beta = jnp.stack([pad2(lp["beta"], 1, d_pad) for lp in params["layers"]])

    # global_mean_pool matrix (graphs x nodes); zero for padded rows/columns.
    counts = jnp.zeros((num_graphs,), jnp.float32).at[batch].add(1.0)
    inv_counts = 1.0 / jnp.maximum(counts, 1.0)
    pool_mat = (jnp.zeros((g_pad, n_pad), jnp.float32)
                .at[batch, jnp.arange(n)].set(inv_counts[batch]))

    out = fused_gnn_pallas(h0_hi, h0_lo, adj, ec, pool_mat,
                           w1, b1, w2, b2, gamma, beta,
                           n_real=n, tm=tm, adj_resident=adj_resident,
                           vmem_limit_bytes=vmem_limit)
    return out[:num_graphs, :emb_dim]


# ---------------------------------------------------------------------------
# Pure-JAX reference (for correctness check only)
# ---------------------------------------------------------------------------
def gnn_graph_reference(params, x, edge_index, edge_attr, batch, num_graphs):
    n = x.shape[0]
    emb_dim = params["x_emb1"].shape[1]
    h = params["x_emb1"][x[:, 0]] + params["x_emb2"][x[:, 1]]
    src = jnp.concatenate([edge_index[0], jnp.arange(n, dtype=edge_index.dtype)])
    dst = jnp.concatenate([edge_index[1], jnp.arange(n, dtype=edge_index.dtype)])
    self_attr = jnp.stack(
        [jnp.full((n,), 4, dtype=edge_attr.dtype),
         jnp.zeros((n,), dtype=edge_attr.dtype)], axis=1)
    ea = jnp.concatenate([edge_attr, self_attr], axis=0)
    num_layer = len(params["layers"])
    for l, lp in enumerate(params["layers"]):
        edge_emb = lp["edge_emb1"][ea[:, 0]] + lp["edge_emb2"][ea[:, 1]]
        msg = h[src] + edge_emb
        aggr = jnp.zeros((n, emb_dim), jnp.float32).at[dst].add(msg)
        h1 = jnp.maximum(aggr @ lp["w1"] + lp["b1"], 0.0)
        h2 = h1 @ lp["w2"] + lp["b2"]
        mean = jnp.mean(h2, axis=0, keepdims=True)
        var = jnp.mean((h2 - mean) ** 2, axis=0, keepdims=True)
        h = (h2 - mean) / jnp.sqrt(var + BN_EPS) * lp["gamma"] + lp["beta"]
        if l != num_layer - 1:
            h = jnp.maximum(h, 0.0)
    counts = jnp.zeros((num_graphs,), jnp.float32).at[batch].add(1.0)
    sums = jnp.zeros((num_graphs, emb_dim), jnp.float32).at[batch].add(h)
    return sums / jnp.maximum(counts, 1.0)[:, None]


# ---------------------------------------------------------------------------
if __name__ == "__main__":
    num_layer = 2
    emb_dim = 32
    n_nodes = 8
    num_graphs = 2

    key = jax.random.PRNGKey(0)
    k_param, k_x0, k_x1, k_e0, k_e1 = jax.random.split(key, 5)
    params = init_params(k_param, num_layer, emb_dim)

    # Two 4-node ring graphs (nodes 0-3 and 4-7), edges in both directions.
    def ring_edges(offset):
        s = [0, 1, 2, 3, 1, 2, 3, 0]
        d = [1, 2, 3, 0, 0, 1, 2, 3]
        return [v + offset for v in s], [v + offset for v in d]

    s0, d0 = ring_edges(0)
    s1, d1 = ring_edges(4)
    edge_index = jnp.array([s0 + s1, d0 + d1], dtype=jnp.int32)   # (2, 16)
    n_edges = edge_index.shape[1]

    x = jnp.stack(
        [jax.random.randint(k_x0, (n_nodes,), 0, NUM_ATOM_TYPE, jnp.int32),
         jax.random.randint(k_x1, (n_nodes,), 0, NUM_CHIRALITY_TAG, jnp.int32)],
        axis=1)                                                   # (8, 2)
    edge_attr = jnp.stack(
        [jax.random.randint(k_e0, (n_edges,), 0, NUM_BOND_TYPE, jnp.int32),
         jax.random.randint(k_e1, (n_edges,), 0, NUM_BOND_DIRECTION, jnp.int32)],
        axis=1)                                                   # (16, 2)
    batch = jnp.array([0, 0, 0, 0, 1, 1, 1, 1], dtype=jnp.int32)  # (8,)

    out = gnn_graph_forward(params, x, edge_index, edge_attr, batch, num_graphs)
    out = jax.block_until_ready(out)

    ref = gnn_graph_reference(params, x, edge_index, edge_attr, batch, num_graphs)
    assert out.shape == (num_graphs, emb_dim)
    # Tolerance accounts for the bf16 hi/lo aggregation (residual ~2^-16) being
    # amplified by BatchNorm's 1/std rescaling relative to the pure-f32 ref.
    assert jnp.allclose(out, ref, atol=2e-3, rtol=2e-3), "mismatch vs reference"

    print("KERNEL_OK")
</pallas_src>

<mosaic_0001>
module attributes {stable_mosaic.version = 11 : i64} {
  func.func @kernel(%arg0: i32, %arg1: i32, %arg2: memref<128x128xbf16, #tpu.memory_space<any>>, %arg3: memref<128x128xbf16, #tpu.memory_space<any>>, %arg4: memref<128x128xbf16, #tpu.memory_space<any>>, %arg5: memref<1x128x32xf32, #tpu.memory_space<vmem>>, %arg6: memref<8x128xf32, #tpu.memory_space<vmem>>, %arg7: memref<1x128x128xf32, #tpu.memory_space<vmem>>, %arg8: memref<1x1x128xf32, #tpu.memory_space<vmem>>, %arg9: memref<1x128x128xf32, #tpu.memory_space<vmem>>, %arg10: memref<1x1x128xf32, #tpu.memory_space<vmem>>, %arg11: memref<1x1x128xf32, #tpu.memory_space<vmem>>, %arg12: memref<1x1x128xf32, #tpu.memory_space<vmem>>, %arg13: memref<8x128xf32, #tpu.memory_space<vmem>>, %arg14: memref<128x128xbf16, #tpu.memory_space<vmem>>, %arg15: memref<128x128xbf16, #tpu.memory_space<vmem>>, %arg16: memref<128x128xbf16, #tpu.memory_space<vmem>>, %arg17: memref<128x128xf32, #tpu.memory_space<vmem>>, %arg18: memref<8x128xf32, #tpu.memory_space<vmem>>, %arg19: memref<2x128xf32, #tpu.memory_space<vmem>>, %arg20: memref<3x!tpu.dma_semaphore, #tpu.memory_space<semaphore_mem>>) attributes {dimension_semantics = [#tpu.dimension_semantics<arbitrary>, #tpu.dimension_semantics<arbitrary>], iteration_bounds = array<i64: 2, 1>, scalar_prefetch = 0 : i64, scratch_operands = 7 : i64, tpu.core_type = #tpu.core_type<tc>, window_params = [{}, {}, {}, {transform_indices = @transform_3, window_bounds = array<i64: 1, 128, 32>}, {transform_indices = @transform_4, window_bounds = array<i64: 8, 128>}, {transform_indices = @transform_5, window_bounds = array<i64: 1, 128, 128>}, {transform_indices = @transform_6, window_bounds = array<i64: 1, 1, 128>}, {transform_indices = @transform_7, window_bounds = array<i64: 1, 128, 128>}, {transform_indices = @transform_8, window_bounds = array<i64: 1, 1, 128>}, {transform_indices = @transform_9, window_bounds = array<i64: 1, 1, 128>}, {transform_indices = @transform_10, window_bounds = array<i64: 1, 1, 128>}, {pipeline_mode = #tpu.pipeline_mode<synchronous>, transform_indices = @transform_11, window_bounds = array<i64: 8, 128>}]} {
    %c0_i32 = arith.constant 0 : i32
    %0 = arith.cmpi eq, %arg0, %c0_i32 : i32
    %c0_i32_0 = arith.constant 0 : i32
    %1 = arith.cmpi eq, %arg1, %c0_i32_0 : i32
    %2 = arith.andi %0, %1 : i1
    %3 = arith.extui %2 : i1 to i32
    %c0_i32_1 = arith.constant 0 : i32
    %4 = arith.cmpi ne, %3, %c0_i32_1 : i32
    scf.if %4 {
      %c0_i32_43 = arith.constant 0 : i32
      %72 = tpu.memref_slice %arg20[%c0_i32_43] : memref<3x!tpu.dma_semaphore, #tpu.memory_space<semaphore_mem>> -> memref<1x!tpu.dma_semaphore, #tpu.memory_space<semaphore_mem>>
      %73 = tpu.memref_squeeze %72 : memref<1x!tpu.dma_semaphore, #tpu.memory_space<semaphore_mem>> -> memref<!tpu.dma_semaphore, #tpu.memory_space<semaphore_mem>>
      tpu.enqueue_dma source(%arg2 : memref<128x128xbf16, #tpu.memory_space<any>>) target(%arg15 : memref<128x128xbf16, #tpu.memory_space<vmem>>) target_semaphore(%73 : memref<!tpu.dma_semaphore, #tpu.memory_space<semaphore_mem>>)
      %c1_i32_44 = arith.constant 1 : i32
      %74 = tpu.memref_slice %arg20[%c1_i32_44] : memref<3x!tpu.dma_semaphore, #tpu.memory_space<semaphore_mem>> -> memref<1x!tpu.dma_semaphore, #tpu.memory_space<semaphore_mem>>
      %75 = tpu.memref_squeeze %74 : memref<1x!tpu.dma_semaphore, #tpu.memory_space<semaphore_mem>> -> memref<!tpu.dma_semaphore, #tpu.memory_space<semaphore_mem>>
      tpu.enqueue_dma source(%arg3 : memref<128x128xbf16, #tpu.memory_space<any>>) target(%arg16 : memref<128x128xbf16, #tpu.memory_space<vmem>>) target_semaphore(%75 : memref<!tpu.dma_semaphore, #tpu.memory_space<semaphore_mem>>)
      %c2_i32 = arith.constant 2 : i32
      %76 = tpu.memref_slice %arg20[%c2_i32] : memref<3x!tpu.dma_semaphore, #tpu.memory_space<semaphore_mem>> -> memref<1x!tpu.dma_semaphore, #tpu.memory_space<semaphore_mem>>
      %77 = tpu.memref_squeeze %76 : memref<1x!tpu.dma_semaphore, #tpu.memory_space<semaphore_mem>> -> memref<!tpu.dma_semaphore, #tpu.memory_space<semaphore_mem>>
      tpu.enqueue_dma source(%arg4 : memref<128x128xbf16, #tpu.memory_space<any>>) target(%arg14 : memref<128x128xbf16, #tpu.memory_space<vmem>>) target_semaphore(%77 : memref<!tpu.dma_semaphore, #tpu.memory_space<semaphore_mem>>)
      %c2_i32_45 = arith.constant 2 : i32
      %78 = tpu.memref_slice %arg20[%c2_i32_45] : memref<3x!tpu.dma_semaphore, #tpu.memory_space<semaphore_mem>> -> memref<1x!tpu.dma_semaphore, #tpu.memory_space<semaphore_mem>>
      %79 = tpu.memref_squeeze %78 : memref<1x!tpu.dma_semaphore, #tpu.memory_space<semaphore_mem>> -> memref<!tpu.dma_semaphore, #tpu.memory_space<semaphore_mem>>
      tpu.wait_dma2 semaphore(%79 : memref<!tpu.dma_semaphore, #tpu.memory_space<semaphore_mem>>) src(%arg4 : memref<128x128xbf16, #tpu.memory_space<any>>) dst(%arg14 : memref<128x128xbf16, #tpu.memory_space<vmem>>)
      %c0_i32_46 = arith.constant 0 : i32
      %80 = tpu.memref_slice %arg20[%c0_i32_46] : memref<3x!tpu.dma_semaphore, #tpu.memory_space<semaphore_mem>> -> memref<1x!tpu.dma_semaphore, #tpu.memory_space<semaphore_mem>>
      %81 = tpu.memref_squeeze %80 : memref<1x!tpu.dma_semaphore, #tpu.memory_space<semaphore_mem>> -> memref<!tpu.dma_semaphore, #tpu.memory_space<semaphore_mem>>
      tpu.wait_dma2 semaphore(%81 : memref<!tpu.dma_semaphore, #tpu.memory_space<semaphore_mem>>) src(%arg2 : memref<128x128xbf16, #tpu.memory_space<any>>) dst(%arg15 : memref<128x128xbf16, #tpu.memory_space<vmem>>)
      %c1_i32_47 = arith.constant 1 : i32
      %82 = tpu.memref_slice %arg20[%c1_i32_47] : memref<3x!tpu.dma_semaphore, #tpu.memory_space<semaphore_mem>> -> memref<1x!tpu.dma_semaphore, #tpu.memory_space<semaphore_mem>>
      %83 = tpu.memref_squeeze %82 : memref<1x!tpu.dma_semaphore, #tpu.memory_space<semaphore_mem>> -> memref<!tpu.dma_semaphore, #tpu.memory_space<semaphore_mem>>
      tpu.wait_dma2 semaphore(%83 : memref<!tpu.dma_semaphore, #tpu.memory_space<semaphore_mem>>) src(%arg3 : memref<128x128xbf16, #tpu.memory_space<any>>) dst(%arg16 : memref<128x128xbf16, #tpu.memory_space<vmem>>)
    } else {
    }
    %c0_i32_2 = arith.constant 0 : i32
    %5 = arith.cmpi eq, %arg1, %c0_i32_2 : i32
    %6 = arith.extui %5 : i1 to i32
    %c0_i32_3 = arith.constant 0 : i32
    %7 = arith.cmpi ne, %6, %c0_i32_3 : i32
    scf.if %7 {
      %cst_43 = arith.constant 0.000000e+00 : f32
      %72 = vector.broadcast %cst_43 : f32 to vector<2x128xf32>
      %c0_44 = arith.constant 0 : index
      %c0_45 = arith.constant 0 : index
      %73 = vector.load %arg19[%c0_44, %c0_45] : memref<2x128xf32, #tpu.memory_space<vmem>>, vector<2x128xf32>
      tpu.vector_store %arg19[%c0_44, %c0_45], %72 {strides = array<i32>} : memref<2x128xf32, #tpu.memory_space<vmem>>, vector<2x128xf32>,
    } else {
    }
    %c1_i32 = arith.constant 1 : i32
    %8 = arith.cmpi eq, %arg0, %c1_i32 : i32
    %c0_i32_4 = arith.constant 0 : i32
    %9 = arith.cmpi eq, %arg1, %c0_i32_4 : i32
    %10 = arith.andi %8, %9 : i1
    %11 = arith.extui %10 : i1 to i32
    %c0_i32_5 = arith.constant 0 : i32
    %12 = arith.cmpi ne, %11, %c0_i32_5 : i32
    scf.if %12 {
      %cst_43 = arith.constant 0.000000e+00 : f32
      %72 = vector.broadcast %cst_43 : f32 to vector<8x128xf32>
      %c0_44 = arith.constant 0 : index
      %c0_45 = arith.constant 0 : index
      %73 = vector.load %arg18[%c0_44, %c0_45] : memref<8x128xf32, #tpu.memory_space<vmem>>, vector<8x128xf32>
      tpu.vector_store %arg18[%c0_44, %c0_45], %72 {strides = array<i32>} : memref<8x128xf32, #tpu.memory_space<vmem>>, vector<8x128xf32>,
    } else {
    }
    %c128_i32 = arith.constant 128 : i32
    %13 = arith.muli %arg1, %c128_i32 : i32
    %14 = tpu.assume_multiple %13, 128 : i32
    %15 = arith.index_cast %14 : i32 to index
    %c0 = arith.constant 0 : index
    %16 = vector.load %arg14[%15, %c0] : memref<128x128xbf16, #tpu.memory_space<vmem>>, vector<128x128xbf16>
    %c0_6 = arith.constant 0 : index
    %c0_7 = arith.constant 0 : index
    %17 = vector.load %arg15[%c0_6, %c0_7] : memref<128x128xbf16, #tpu.memory_space<vmem>>, vector<128x128xbf16>
    %cst = arith.constant dense<0.000000e+00> : vector<128x128xf32>
    %18 = tpu.matmul %16, %17, %cst {dimension_numbers = #tpu.dot_dimension_numbers<[1], [0], [0], [1], [0, 0, 1, 1], [], []>} : vector<128x128xbf16>, vector<128x128xbf16>, vector<128x128xf32> -> vector<128x128xf32>
    %c0_8 = arith.constant 0 : index
    %c0_9 = arith.constant 0 : index
    %19 = vector.load %arg16[%c0_8, %c0_9] : memref<128x128xbf16, #tpu.memory_space<vmem>>, vector<128x128xbf16>
    %cst_10 = arith.constant dense<0.000000e+00> : vector<128x128xf32>
    %20 = tpu.matmul %16, %19, %cst_10 {dimension_numbers = #tpu.dot_dimension_numbers<[1], [0], [0], [1], [0, 0, 1, 1], [], []>} : vector<128x128xbf16>, vector<128x128xbf16>, vector<128x128xf32> -> vector<128x128xf32>
    %21 = arith.addf %18, %20 : vector<128x128xf32>
    %c0_11 = arith.constant 0 : index
    %c0_12 = arith.constant 0 : index
    %c0_13 = arith.constant 0 : index
    %22 = vector.load %arg7[%c0_11, %c0_12, %c0_13] : memref<1x128x128xf32, #tpu.memory_space<vmem>>, vector<1x128x128xf32>
    %23 = vector.shape_cast %22 : vector<1x128x128xf32> to vector<128x128xf32>
    %cst_14 = arith.constant dense<0.000000e+00> : vector<128x128xf32>
    %24 = tpu.matmul %21, %23, %cst_14 {dimension_numbers = #tpu.dot_dimension_numbers<[1], [0], [0], [1], [0, 0, 1, 1], [], []>} : vector<128x128xf32>, vector<128x128xf32>, vector<128x128xf32> -> vector<128x128xf32>
    %c0_15 = arith.constant 0 : index
    %c0_16 = arith.constant 0 : index
    %c0_17 = arith.constant 0 : index
    %25 = vector.load %arg5[%c0_15, %c0_16, %c0_17] : memref<1x128x32xf32, #tpu.memory_space<vmem>>, vector<1x128x32xf32>
    %26 = vector.shape_cast %25 : vector<1x128x32xf32> to vector<128x32xf32>
    %27 = vector.extract_strided_slice %23 {offsets = [0, 0], sizes = [32, 128], strides = [1, 1]} : vector<128x128xf32> to vector<32x128xf32>
    %cst_18 = arith.constant dense<0.000000e+00> : vector<128x128xf32>
    %28 = tpu.matmul %26, %27, %cst_18 {dimension_numbers = #tpu.dot_dimension_numbers<[1], [0], [0], [1], [0, 0, 1, 1], [], []>} : vector<128x32xf32>, vector<32x128xf32>, vector<128x128xf32> -> vector<128x128xf32>
    %29 = arith.addf %24, %28 : vector<128x128xf32>
    %c0_19 = arith.constant 0 : index
    %c0_20 = arith.constant 0 : index
    %c0_21 = arith.constant 0 : index
    %30 = vector.load %arg8[%c0_19, %c0_20, %c0_21] : memref<1x1x128xf32, #tpu.memory_space<vmem>>, vector<1x1x128xf32>
    %31 = vector.shape_cast %30 : vector<1x1x128xf32> to vector<1x128xf32>
    %32 = vector.broadcast %31 : vector<1x128xf32> to vector<128x128xf32>
    %33 = arith.addf %29, %32 : vector<128x128xf32>
    %cst_22 = arith.constant 0.000000e+00 : f32
    %34 = vector.broadcast %cst_22 : f32 to vector<128x128xf32>
    %35 = arith.maximumf %33, %34 : vector<128x128xf32>
    %c0_23 = arith.constant 0 : index
    %c0_24 = arith.constant 0 : index
    %c0_25 = arith.constant 0 : index
    %36 = vector.load %arg9[%c0_23, %c0_24, %c0_25] : memref<1x128x128xf32, #tpu.memory_space<vmem>>, vector<1x128x128xf32>
    %37 = vector.shape_cast %36 : vector<1x128x128xf32> to vector<128x128xf32>
    %cst_26 = arith.constant dense<0.000000e+00> : vector<128x128xf32>
    %38 = tpu.matmul %35, %37, %cst_26 {dimension_numbers = #tpu.dot_dimension_numbers<[1], [0], [0], [1], [0, 0, 1, 1], [], []>} : vector<128x128xf32>, vector<128x128xf32>, vector<128x128xf32> -> vector<128x128xf32>
    %c0_27 = arith.constant 0 : index
    %c0_28 = arith.constant 0 : index
    %c0_29 = arith.constant 0 : index
    %39 = vector.load %arg10[%c0_27, %c0_28, %c0_29] : memref<1x1x128xf32, #tpu.memory_space<vmem>>, vector<1x1x128xf32>
    %40 = vector.shape_cast %39 : vector<1x1x128xf32> to vector<1x128xf32>
    %41 = vector.broadcast %40 : vector<1x128xf32> to vector<128x128xf32>
    %42 = arith.addf %38, %41 : vector<128x128xf32>
    %43 = tpu.iota {dimensions = array<i32: 0>} : vector<128x1xi32>
    %44 = vector.broadcast %14 : i32 to vector<128x1xi32>
    %45 = arith.addi %43, %44 : vector<128x1xi32>
    %c8_i32 = arith.constant 8 : i32
    %46 = vector.broadcast %c8_i32 : i32 to vector<128x1xi32>
    %47 = arith.cmpi slt, %45, %46 : vector<128x1xi32>
    %cst_30 = arith.constant 1.250000e-01 : f32
    %cst_31 = arith.constant 0.000000e+00 : f32
    %48 = vector.broadcast %cst_30 : f32 to vector<128x1xf32>
    %49 = vector.broadcast %cst_31 : f32 to vector<128x1xf32>
    %50 = arith.select %47, %48, %49 : vector<128x1xi1>, vector<128x1xf32>
    %51 = vector.broadcast %50 : vector<128x1xf32> to vector<128x128xf32>
    %52 = arith.mulf %42, %51 : vector<128x128xf32>
    %cst_32 = arith.constant dense<0.000000e+00> : vector<128xf32>
    %53 = vector.multi_reduction <add>, %52, %cst_32 [0] : vector<128x128xf32> to vector<128xf32>
    %54 = vector.shape_cast %53 : vector<128xf32> to vector<1x128xf32>
    %55 = arith.mulf %42, %42 : vector<128x128xf32>
    %56 = vector.broadcast %50 : vector<128x1xf32> to vector<128x128xf32>
    %57 = arith.mulf %55, %56 : vector<128x128xf32>
    %cst_33 = arith.constant dense<0.000000e+00> : vector<128xf32>
    %58 = vector.multi_reduction <add>, %57, %cst_33 [0] : vector<128x128xf32> to vector<128xf32>
    %59 = vector.shape_cast %58 : vector<128xf32> to vector<1x128xf32>
    %c0_34 = arith.constant 0 : index
    %c0_35 = arith.constant 0 : index
    %60 = vector.load %arg19[%c0_34, %c0_35] : memref<2x128xf32, #tpu.memory_space<vmem>>, vector<2x128xf32>
    %61 = tpu.concatenate %54, %59 in 0 : vector<1x128xf32>, vector<1x128xf32> -> vector<2x128xf32>
    %62 = arith.addf %60, %61 : vector<2x128xf32>
    %c0_36 = arith.constant 0 : index
    %c0_37 = arith.constant 0 : index
    %63 = vector.load %arg19[%c0_36, %c0_37] : memref<2x128xf32, #tpu.memory_space<vmem>>, vector<2x128xf32>
    tpu.vector_store %arg19[%c0_36, %c0_37], %62 {strides = array<i32>} : memref<2x128xf32, #tpu.memory_space<vmem>>, vector<2x128xf32>,
    %64 = arith.index_cast %14 : i32 to index
    %c0_38 = arith.constant 0 : index
    %65 = vector.load %arg17[%64, %c0_38] : memref<128x128xf32, #tpu.memory_space<vmem>>, vector<128x128xf32>
    tpu.vector_store %arg17[%64, %c0_38], %42 {strides = array<i32>} : memref<128x128xf32, #tpu.memory_space<vmem>>, vector<128x128xf32>,
    %c1_i32_39 = arith.constant 1 : i32
    %66 = arith.cmpi eq, %arg0, %c1_i32_39 : i32
    %67 = arith.extui %66 : i1 to i32
    %c0_i32_40 = arith.constant 0 : i32
    %68 = arith.cmpi ne, %67, %c0_i32_40 : i32
    scf.if %68 {
      %c0_43 = arith.constant 0 : index
      %c0_44 = arith.constant 0 : index
      %72 = vector.load %arg18[%c0_43, %c0_44] : memref<8x128xf32, #tpu.memory_space<vmem>>, vector<8x128xf32>
      %c0_45 = arith.constant 0 : index
      %c0_46 = arith.constant 0 : index
      %73 = vector.load %arg6[%c0_45, %c0_46] : memref<8x128xf32, #tpu.memory_space<vmem>>, vector<8x128xf32>
      %cst_47 = arith.constant dense<0.000000e+00> : vector<8x128xf32>
      %74 = tpu.matmul %73, %42, %cst_47 {dimension_numbers = #tpu.dot_dimension_numbers<[1], [0], [0], [1], [0, 0, 1, 1], [], []>} : vector<8x128xf32>, vector<128x128xf32>, vector<8x128xf32> -> vector<8x128xf32>
      %75 = arith.addf %72, %74 : vector<8x128xf32>
      %c0_48 = arith.constant 0 : index
      %c0_49 = arith.constant 0 : index
      %76 = vector.load %arg18[%c0_48, %c0_49] : memref<8x128xf32, #tpu.memory_space<vmem>>, vector<8x128xf32>
      tpu.vector_store %arg18[%c0_48, %c0_49], %75 {strides = array<i32>} : memref<8x128xf32, #tpu.memory_space<vmem>>, vector<8x128xf32>,
    } else {
    }
    %c0_i32_41 = arith.constant 0 : i32
    %69 = arith.cmpi eq, %arg1, %c0_i32_41 : i32
    %70 = arith.extui %69 : i1 to i32
    %c0_i32_42 = arith.constant 0 : i32
    %71 = arith.cmpi ne, %70, %c0_i32_42 : i32
    scf.if %71 {
      %c0_43 = arith.constant 0 : index
      %c0_44 = arith.constant 0 : index
      %72 = vector.load %arg19[%c0_43, %c0_44] : memref<2x128xf32, #tpu.memory_space<vmem>>, vector<2x128xf32>
      %73 = vector.extract_strided_slice %72 {offsets = [0, 0], sizes = [1, 128], strides = [1, 1]} : vector<2x128xf32> to vector<1x128xf32>
      %74 = vector.extract_strided_slice %72 {offsets = [1, 0], sizes = [1, 128], strides = [1, 1]} : vector<2x128xf32> to vector<1x128xf32>
      %75 = arith.mulf %73, %73 : vector<1x128xf32>
      %76 = arith.subf %74, %75 : vector<1x128xf32>
      %cst_45 = arith.constant 0.000000e+00 : f32
      %77 = vector.broadcast %cst_45 : f32 to vector<1x128xf32>
      %78 = arith.maximumf %76, %77 : vector<1x128xf32>
      %cst_46 = arith.constant 9.99999974E-6 : f32
      %79 = vector.broadcast %cst_46 : f32 to vector<1x128xf32>
      %80 = arith.addf %78, %79 : vector<1x128xf32>
      %81 = math.rsqrt %80 : vector<1x128xf32>
      %c0_47 = arith.constant 0 : index
      %c0_48 = arith.constant 0 : index
      %c0_49 = arith.constant 0 : index
      %82 = vector.load %arg11[%c0_47, %c0_48, %c0_49] : memref<1x1x128xf32, #tpu.memory_space<vmem>>, vector<1x1x128xf32>
      %83 = vector.shape_cast %82 : vector<1x1x128xf32> to vector<1x128xf32>
      %84 = arith.mulf %81, %83 : vector<1x128xf32>
      %c0_50 = arith.constant 0 : index
      %c0_51 = arith.constant 0 : index
      %c0_52 = arith.constant 0 : index
      %85 = vector.load %arg12[%c0_50, %c0_51, %c0_52] : memref<1x1x128xf32, #tpu.memory_space<vmem>>, vector<1x1x128xf32>
      %86 = vector.shape_cast %85 : vector<1x1x128xf32> to vector<1x128xf32>
      %87 = arith.mulf %73, %84 : vector<1x128xf32>
      %88 = arith.subf %86, %87 : vector<1x128xf32>
      %c1_i32_53 = arith.constant 1 : i32
      %89 = arith.cmpi ne, %arg0, %c1_i32_53 : i32
      %90 = arith.extui %89 : i1 to i32
      %c0_i32_54 = arith.constant 0 : i32
      %91 = arith.cmpi ne, %90, %c0_i32_54 : i32
      scf.if %91 {
        %c0_i32_57 = arith.constant 0 : i32
        %c1_i32_58 = arith.constant 1 : i32
        %95 = arith.muli %c0_i32_57, %c1_i32_58 : i32
        %c0_i32_59 = arith.constant 0 : i32
        %96 = arith.addi %c0_i32_59, %95 : i32
        %c128_i32_60 = arith.constant 128 : i32
        %97 = arith.muli %96, %c128_i32_60 : i32
        %98 = tpu.assume_multiple %97, 128 : i32
        %99 = arith.index_cast %98 : i32 to index
        %c0_61 = arith.constant 0 : index
        %100 = vector.load %arg17[%99, %c0_61] : memref<128x128xf32, #tpu.memory_space<vmem>>, vector<128x128xf32>
        %101 = vector.broadcast %84 : vector<1x128xf32> to vector<128x128xf32>
        %102 = arith.mulf %100, %101 : vector<128x128xf32>
        %103 = vector.broadcast %88 : vector<1x128xf32> to vector<128x128xf32>
        %104 = arith.addf %102, %103 : vector<128x128xf32>
        %cst_62 = arith.constant 0.000000e+00 : f32
        %105 = vector.broadcast %cst_62 : f32 to vector<128x128xf32>
        %106 = arith.maximumf %104, %105 : vector<128x128xf32>
        %107 = arith.truncf %106 : vector<128x128xf32> to vector<128x128xbf16>
        %108 = arith.extf %107 : vector<128x128xbf16> to vector<128x128xf32>
        %109 = arith.subf %106, %108 : vector<128x128xf32>
        %110 = arith.truncf %109 : vector<128x128xf32> to vector<128x128xbf16>
        %111 = arith.index_cast %98 : i32 to index
        %c0_63 = arith.constant 0 : index
        %112 = vector.load %arg15[%111, %c0_63] : memref<128x128xbf16, #tpu.memory_space<vmem>>, vector<128x128xbf16>
        tpu.vector_store %arg15[%111, %c0_63], %107 {strides = array<i32>} : memref<128x128xbf16, #tpu.memory_space<vmem>>, vector<128x128xbf16>,
        %113 = arith.index_cast %98 : i32 to index
        %c0_64 = arith.constant 0 : index
        %114 = vector.load %arg16[%113, %c0_64] : memref<128x128xbf16, #tpu.memory_space<vmem>>, vector<128x128xbf16>
        tpu.vector_store %arg16[%113, %c0_64], %110 {strides = array<i32>} : memref<128x128xbf16, #tpu.memory_space<vmem>>, vector<128x128xbf16>,
        %c1_i32_65 = arith.constant 1 : i32
      } else {
      }
      %c1_i32_55 = arith.constant 1 : i32
      %92 = arith.cmpi eq, %arg0, %c1_i32_55 : i32
      %93 = arith.extui %92 : i1 to i32
      %c0_i32_56 = arith.constant 0 : i32
      %94 = arith.cmpi ne, %93, %c0_i32_56 : i32
      scf.if %94 {
        %c0_57 = arith.constant 0 : index
        %c0_58 = arith.constant 0 : index
        %95 = vector.load %arg18[%c0_57, %c0_58] : memref<8x128xf32, #tpu.memory_space<vmem>>, vector<8x128xf32>
        %96 = vector.broadcast %84 : vector<1x128xf32> to vector<8x128xf32>
        %97 = arith.mulf %95, %96 : vector<8x128xf32>
        %98 = vector.broadcast %88 : vector<1x128xf32> to vector<8x128xf32>
        %99 = arith.addf %97, %98 : vector<8x128xf32>
        %c0_59 = arith.constant 0 : index
        %c0_60 = arith.constant 0 : index
        %100 = vector.load %arg13[%c0_59, %c0_60] : memref<8x128xf32, #tpu.memory_space<vmem>>, vector<8x128xf32>
        tpu.vector_store %arg13[%c0_59, %c0_60], %99 {strides = array<i32>} : memref<8x128xf32, #tpu.memory_space<vmem>>, vector<8x128xf32>,
      } else {
      }
    } else {
    }
    return
  }
  func.func @transform_3(%arg0: i32, %arg1: i32) -> (i32, i32, i32) {
    %c0_i32 = arith.constant 0 : i32
    %c0_i32_0 = arith.constant 0 : i32
    return %arg0, %arg1, %c0_i32 : i32, i32, i32
  }
  func.func @transform_4(%arg0: i32, %arg1: i32) -> (i32, i32) {
    %c0_i32 = arith.constant 0 : i32
    %c0_i32_0 = arith.constant 0 : i32
    return %c0_i32, %arg1 : i32, i32
  }
  func.func @transform_5(%arg0: i32, %arg1: i32) -> (i32, i32, i32) {
    %c0_i32 = arith.constant 0 : i32
    %c0_i32_0 = arith.constant 0 : i32
    %c0_i32_1 = arith.constant 0 : i32
    return %arg0, %c0_i32, %c0_i32_0 : i32, i32, i32
  }
  func.func @transform_6(%arg0: i32, %arg1: i32) -> (i32, i32, i32) {
    %c0_i32 = arith.constant 0 : i32
    %c0_i32_0 = arith.constant 0 : i32
    %c0_i32_1 = arith.constant 0 : i32
    return %arg0, %c0_i32, %c0_i32_0 : i32, i32, i32
  }
  func.func @transform_7(%arg0: i32, %arg1: i32) -> (i32, i32, i32) {
    %c0_i32 = arith.constant 0 : i32
    %c0_i32_0 = arith.constant 0 : i32
    %c0_i32_1 = arith.constant 0 : i32
    return %arg0, %c0_i32, %c0_i32_0 : i32, i32, i32
  }
  func.func @transform_8(%arg0: i32, %arg1: i32) -> (i32, i32, i32) {
    %c0_i32 = arith.constant 0 : i32
    %c0_i32_0 = arith.constant 0 : i32
    %c0_i32_1 = arith.constant 0 : i32
    return %arg0, %c0_i32, %c0_i32_0 : i32, i32, i32
  }
  func.func @transform_9(%arg0: i32, %arg1: i32) -> (i32, i32, i32) {
    %c0_i32 = arith.constant 0 : i32
    %c0_i32_0 = arith.constant 0 : i32
    %c0_i32_1 = arith.constant 0 : i32
    return %arg0, %c0_i32, %c0_i32_0 : i32, i32, i32
  }
  func.func @transform_10(%arg0: i32, %arg1: i32) -> (i32, i32, i32) {
    %c0_i32 = arith.constant 0 : i32
    %c0_i32_0 = arith.constant 0 : i32
    %c0_i32_1 = arith.constant 0 : i32
    return %arg0, %c0_i32, %c0_i32_0 : i32, i32, i32
  }
  func.func @transform_11(%arg0: i32, %arg1: i32) -> (i32, i32) {
    %c0_i32 = arith.constant 0 : i32
    %c0_i32_0 = arith.constant 0 : i32
    %c0_i32_1 = arith.constant 0 : i32
    return %c0_i32, %c0_i32_0 : i32, i32
  }
}

</mosaic_0001>

<llo_original>
// kernel: tpu_custom_call.1
$region0: #{tpu_custom_call.1}
  #allocation0 [shape = 'u32[]', space=smem, size = 0x4, offset = 0x4, fixed_abs, tag = 'smem constant byte address 0x4 - core index']
  #allocation1 [shape = 'u32[144,128]{1,0:T(1,128)}', space=vmem, size = 0x12000, scoped, tag = 'internal scratch']
  #allocation2 [shape = 'bf16[128,128]{1,0:T(16,128)(2,1)}', space=vmem, size = 0x8000, scoped, tag = 'scratch operand']
  #allocation3 [shape = 'bf16[128,128]{1,0:T(16,128)(2,1)}', space=vmem, size = 0x8000, scoped, tag = 'scratch operand']
  #allocation4 [shape = 'bf16[128,128]{1,0:T(16,128)(2,1)}', space=vmem, size = 0x8000, scoped, tag = 'scratch operand']
  #allocation5 [shape = 'f32[128,128]{1,0:T(8,128)}', space=vmem, size = 0x10000, scoped, tag = 'scratch operand']
  #allocation6 [shape = 'f32[8,128]{1,0:T(8,128)}', space=vmem, size = 0x1000, scoped, tag = 'scratch operand']
  #allocation7 [shape = 'f32[2,128]{1,0:T(2,128)}', space=vmem, size = 0x400, scoped, tag = 'scratch operand']
  #allocation8 [shape = 's32[3]{0}', space=sflag, size = 0xc, scoped, tag = 'scratch operand']
  #allocation13 [shape = 's32[]', space=sflag, size = 0x4, offset = 0, fixed_abs, tag = 'sflag constant byte address 0x0 - dummy sync flag']
  #allocation14 [shape = 's32[]', space=sflag, size = 0x4, offset = 0, fixed_abs, tag = 'sflag constant byte address 0x0 - dummy sync flag']
  #allocation15 [shape = 's32[]', space=sflag, size = 0x4, offset = 0, fixed_abs, tag = 'sflag constant byte address 0x0 - dummy sync flag']
  #allocation16 [shape = 'u32[]', space=smem, size = 0x4, offset = 0x44, fixed_abs, tag = 'smem constant byte address 0x44 - assertion arg 0']
  #allocation17 [shape = 'u32[]', space=smem, size = 0x4, offset = 0x48, fixed_abs, tag = 'smem constant byte address 0x48 - assertion arg 1']
  #allocation18 [shape = 's32[]', space=sflag, size = 0x4, offset = 0, fixed_abs, tag = 'sflag constant byte address 0x0 - dummy sync flag']
  #allocation19 [shape = 's32[]', space=sflag, size = 0x4, offset = 0, fixed_abs, tag = 'sflag constant byte address 0x0 - dummy sync flag']
  %s0 = inlined_call_operand.vmem [shape: bf16[128,128], index: 0, kind: input, shape index: {}]
  %s1 = inlined_call_operand.hbm [shape: bf16[128,128], index: 1, kind: input, shape index: {}]
  %s2 = inlined_call_operand.hbm [shape: bf16[128,128], index: 2, kind: input, shape index: {}]
  %s3 = inlined_call_operand.vmem [shape: f32[2,128,32], index: 3, kind: input, shape index: {}]
  %s4 = inlined_call_operand.vmem [shape: f32[8,128], index: 4, kind: input, shape index: {}]
  %s5 = inlined_call_operand.vmem [shape: f32[2,128,128], index: 5, kind: input, shape index: {}]
  %s6 = inlined_call_operand.vmem [shape: f32[2,1,128], index: 6, kind: input, shape index: {}]
  %s7 = inlined_call_operand.hbm [shape: f32[2,128,128], index: 7, kind: input, shape index: {}]
  %s8 = inlined_call_operand.vmem [shape: f32[2,1,128], index: 8, kind: input, shape index: {}]
  %s9 = inlined_call_operand.vmem [shape: f32[2,1,128], index: 9, kind: input, shape index: {}]
  %s10 = inlined_call_operand.vmem [shape: f32[2,1,128], index: 10, kind: input, shape index: {}]
  %s11 = inlined_call_operand.hbm [shape: f32[8,128], index: 11, kind: output, shape index: {}]
  %s12 = sld [smem:[#allocation0]]
  $region139: #{tpu_custom_call.1} parent=0
    _
  %s14 = ssub.s32 1, %s12
  %s15 = scalar_select 0, %s14, %s12
  $region1: #{tpu_custom_call.1} parent=0
    #allocation9 [shape = 'u8[131072]{0}', space=vmem, size = 0x20000, scoped, tag = 'input window, operand 7']
    #allocation10 [shape = 's32[2]{0}', space=sflag, size = 0x8, scoped, tag = 'scoped memory for tpu_custom_call.1']
    #allocation11 [shape = 's32[2]{0}', space=sflag, size = 0x8, scoped, tag = 'scoped memory for tpu_custom_call.1']
    #allocation12 [shape = 'u8[4096]{0}', space=vmem, size = 0x1000, scoped, tag = 'output window, operand 0, single buffered']
    %16 = vsyncpa [#allocation10], 0
    %s17 = scalar_lea.sflag [#allocation10], 1
    %18 = vsyncpa %s17, 0
    %19 = vsyncpa [#allocation11], 0
    loop: start=0, step=1, limit=4
    $region2: #{tpu_custom_call.1} parent=1 // loop_pre_header
      _
    $region3: #{tpu_custom_call.1} parent=1 // loop_header
      %s21 = sphi 0, %s25
      %p22 = scmp.ge.s32.totalorder %s21, 4
      %s28 = sphi 0, %s40
      %s29 = sphi 0, %s36
      %s30 = sphi 0, %s28
      %s31 = sphi 0, %s29
      %s32 = sphi 0, %s30
      %s33 = sphi 0, %s31
      %s45 = sphi 0, %s47
      %s48 = sphi 0, %s45
      %s49 = sphi 0, %s48
      %s65 = sphi 0, %s49
      %s71 = sphi 0, %s73
      %s74 = sphi 0, %s71
      %s75 = sphi 0, %s74
      %s91 = sphi 0, %s75
      %s97 = sphi 0, %s99
      %s100 = sphi 0, %s97
      %s101 = sphi 0, %s100
      %s117 = sphi 0, %s101
      %s123 = sphi 0, %s125
      %s126 = sphi 0, %s123
      %s127 = sphi 0, %s126
      %s143 = sphi 0, %s127
      %s149 = sphi 0, %s151
      %s152 = sphi 0, %s149
      %s153 = sphi 0, %s152
      %s169 = sphi 0, %s153
      %s175 = sphi 0, %s177
      %s178 = sphi 0, %s175
      %s179 = sphi 0, %s178
      %s195 = sphi 0, %s179
      %s201 = sphi 0, %s203
      %s204 = sphi 0, %s201
      %s205 = sphi 0, %s204
      %s221 = sphi 0, %s205
      %s227 = sphi 0, %s229
      %s230 = sphi 0, %s227
      %s231 = sphi 0, %s230
      %s247 = sphi 0, %s231
      %s251 = sphi 0, %s251
      %s253 = sphi 0, %s251
      %s254 = sphi 0, %s253
      %s268 = sphi 0, %s254
    $region4: #{tpu_custom_call.1} parent=1 // loop_header_branch
      %24 = sbr.rel (%p22) target = $region8
    $region5: #{tpu_custom_call.1} parent=1 // loop_body
      %s26 = ssub.s32 %s21, 1
      %s27 = ssub.s32 %s21, 2
      %s34 = sadd.s32 1, %s29
      %p35 = scmp.ge.s32.totalorder %s34, 1
      %s36 = scalar_select %p35, 0, %s34
      %s37 = sadd.s32 1, %s28
      %s38 = scalar_select %p35, %s37, %s28
      %p39 = scmp.ge.s32.totalorder %s38, 2
      %s40 = scalar_select %p39, 0, %s38
      %s41 = ssub.s32 %s28, %s40
      %s42 = ssub.s32 %s29, %s36
      %s43 = sor.u32 %s41, %s42
      %p44 = scmp.eq.s32.totalorder %s43, 0
      %s46 = sadd.s32 %s45, 1
      %s47 = scalar_select %p44, %s45, %s46
      %p50 = pneg %p44
      %p51 = scmp.eq.s32.totalorder %s21, 1
      %p52 = por %p50, %p51
      %p53 = scmp.ne.s32.totalorder %s45, %s48
      %p54 = scmp.eq.s32.totalorder %s21, 0
      %p55 = por %p53, %p54
      %p56 = scmp.ne.s32.totalorder %s45, %s48
      %p57 = scmp.eq.s32.totalorder %s26, 1
      %p58 = por %p56, %p57
      %p59 = scmp.ne.s32.totalorder %s48, %s49
      %p60 = scmp.eq.s32.totalorder %s26, 0
      %p61 = por %p59, %p60
      %p62 = scmp.ne.s32.totalorder %s48, %s49
      %p63 = scmp.eq.s32.totalorder %s27, 1
      %p64 = por %p62, %p63
      %p66 = scmp.ne.s32.totalorder %s49, %s65
      %p67 = scmp.eq.s32.totalorder %s27, 0
      %p68 = por %p66, %p67
      %s69 = ssub.s32 %s29, %s36
      %p70 = scmp.eq.s32.totalorder %s69, 0
      %s72 = sadd.s32 %s71, 1
      %s73 = scalar_select %p70, %s71, %s72
      %p76 = pneg %p70
      %p77 = scmp.eq.s32.totalorder %s21, 1
      %p78 = por %p76, %p77
      %p79 = scmp.ne.s32.totalorder %s71, %s74
      %p80 = scmp.eq.s32.totalorder %s21, 0
      %p81 = por %p79, %p80
      %p82 = scmp.ne.s32.totalorder %s71, %s74
      %p83 = scmp.eq.s32.totalorder %s26, 1
      %p84 = por %p82, %p83
      %p85 = scmp.ne.s32.totalorder %s74, %s75
      %p86 = scmp.eq.s32.totalorder %s26, 0
      %p87 = por %p85, %p86
      %p88 = scmp.ne.s32.totalorder %s74, %s75
      %p89 = scmp.eq.s32.totalorder %s27, 1
      %p90 = por %p88, %p89
      %p92 = scmp.ne.s32.totalorder %s75, %s91
      %p93 = scmp.eq.s32.totalorder %s27, 0
      %p94 = por %p92, %p93
      %s95 = ssub.s32 %s28, %s40
      %p96 = scmp.eq.s32.totalorder %s95, 0
      %s98 = sadd.s32 %s97, 1
      %s99 = scalar_select %p96, %s97, %s98
      %p102 = pneg %p96
      %p103 = scmp.eq.s32.totalorder %s21, 1
      %p104 = por %p102, %p103
      %p105 = scmp.ne.s32.totalorder %s97, %s100
      %p106 = scmp.eq.s32.totalorder %s21, 0
      %p107 = por %p105, %p106
      %p108 = scmp.ne.s32.totalorder %s97, %s100
      %p109 = scmp.eq.s32.totalorder %s26, 1
      %p110 = por %p108, %p109
      %p111 = scmp.ne.s32.totalorder %s100, %s101
      %p112 = scmp.eq.s32.totalorder %s26, 0
      %p113 = por %p111, %p112
      %p114 = scmp.ne.s32.totalorder %s100, %s101
      %p115 = scmp.eq.s32.totalorder %s27, 1
      %p116 = por %p114, %p115
      %p118 = scmp.ne.s32.totalorder %s101, %s117
      %p119 = scmp.eq.s32.totalorder %s27, 0
      %p120 = por %p118, %p119
      %s121 = ssub.s32 %s28, %s40
      %p122 = scmp.eq.s32.totalorder %s121, 0
      %s124 = sadd.s32 %s123, 1
      %s125 = scalar_select %p122, %s123, %s124
      %p128 = pneg %p122
      %p129 = scmp.eq.s32.totalorder %s21, 1
      %p130 = por %p128, %p129
      %p131 = scmp.ne.s32.totalorder %s123, %s126
      %p132 = scmp.eq.s32.totalorder %s21, 0
      %p133 = por %p131, %p132
      %p134 = scmp.ne.s32.totalorder %s123, %s126
      %p135 = scmp.eq.s32.totalorder %s26, 1
      %p136 = por %p134, %p135
      %p137 = scmp.ne.s32.totalorder %s126, %s127
      %p138 = scmp.eq.s32.totalorder %s26, 0
      %p139 = por %p137, %p138
      %p140 = scmp.ne.s32.totalorder %s126, %s127
      %p141 = scmp.eq.s32.totalorder %s27, 1
      %p142 = por %p140, %p141
      %p144 = scmp.ne.s32.totalorder %s127, %s143
      %p145 = scmp.eq.s32.totalorder %s27, 0
      %p146 = por %p144, %p145
      %s147 = ssub.s32 %s28, %s40
      %p148 = scmp.eq.s32.totalorder %s147, 0
      %s150 = sadd.s32 %s149, 1
      %s151 = scalar_select %p148, %s149, %s150
      %p154 = pneg %p148
      %p155 = scmp.eq.s32.totalorder %s21, 1
      %p156 = por %p154, %p155
      %p157 = scmp.ne.s32.totalorder %s149, %s152
      %p158 = scmp.eq.s32.totalorder %s21, 0
      %p159 = por %p157, %p158
      %p160 = scmp.ne.s32.totalorder %s149, %s152
      %p161 = scmp.eq.s32.totalorder %s26, 1
      %p162 = por %p160, %p161
      %p163 = scmp.ne.s32.totalorder %s152, %s153
      %p164 = scmp.eq.s32.totalorder %s26, 0
      %p165 = por %p163, %p164
      %p166 = scmp.ne.s32.totalorder %s152, %s153
      %p167 = scmp.eq.s32.totalorder %s27, 1
      %p168 = por %p166, %p167
      %p170 = scmp.ne.s32.totalorder %s153, %s169
      %p171 = scmp.eq.s32.totalorder %s27, 0
      %p172 = por %p170, %p171
      %s173 = ssub.s32 %s28, %s40
      %p174 = scmp.eq.s32.totalorder %s173, 0
      %s176 = sadd.s32 %s175, 1
      %s177 = scalar_select %p174, %s175, %s176
      %p180 = pneg %p174
      %p181 = scmp.eq.s32.totalorder %s21, 1
      %p182 = por %p180, %p181
      %p183 = scmp.ne.s32.totalorder %s175, %s178
      %p184 = scmp.eq.s32.totalorder %s21, 0
      %p185 = por %p183, %p184
      %p186 = scmp.ne.s32.totalorder %s175, %s178
      %p187 = scmp.eq.s32.totalorder %s26, 1
      %p188 = por %p186, %p187
      %p189 = scmp.ne.s32.totalorder %s178, %s179
      %p190 = scmp.eq.s32.totalorder %s26, 0
      %p191 = por %p189, %p190
      %p192 = scmp.ne.s32.totalorder %s178, %s179
      %p193 = scmp.eq.s32.totalorder %s27, 1
      %p194 = por %p192, %p193
      %p196 = scmp.ne.s32.totalorder %s179, %s195
      %p197 = scmp.eq.s32.totalorder %s27, 0
      %p198 = por %p196, %p197
      %s199 = ssub.s32 %s28, %s40
      %p200 = scmp.eq.s32.totalorder %s199, 0
      %s202 = sadd.s32 %s201, 1
      %s203 = scalar_select %p200, %s201, %s202
      %p206 = pneg %p200
      %p207 = scmp.eq.s32.totalorder %s21, 1
      %p208 = por %p206, %p207
      %p209 = scmp.ne.s32.totalorder %s201, %s204
      %p210 = scmp.eq.s32.totalorder %s21, 0
      %p211 = por %p209, %p210
      %p212 = scmp.ne.s32.totalorder %s201, %s204
      %p213 = scmp.eq.s32.totalorder %s26, 1
      %p214 = por %p212, %p213
      %p215 = scmp.ne.s32.totalorder %s204, %s205
      %p216 = scmp.eq.s32.totalorder %s26, 0
      %p217 = por %p215, %p216
      %p218 = scmp.ne.s32.totalorder %s204, %s205
      %p219 = scmp.eq.s32.totalorder %s27, 1
      %p220 = por %p218, %p219
      %p222 = scmp.ne.s32.totalorder %s205, %s221
      %p223 = scmp.eq.s32.totalorder %s27, 0
      %p224 = por %p222, %p223
      %s225 = ssub.s32 %s28, %s40
      %p226 = scmp.eq.s32.totalorder %s225, 0
      %s228 = sadd.s32 %s227, 1
      %s229 = scalar_select %p226, %s227, %s228
      %p232 = pneg %p226
      %p233 = scmp.eq.s32.totalorder %s21, 1
      %p234 = por %p232, %p233
      %p235 = scmp.ne.s32.totalorder %s227, %s230
      %p236 = scmp.eq.s32.totalorder %s21, 0
      %p237 = por %p235, %p236
      %p238 = scmp.ne.s32.totalorder %s227, %s230
      %p239 = scmp.eq.s32.totalorder %s26, 1
      %p240 = por %p238, %p239
      %p241 = scmp.ne.s32.totalorder %s230, %s231
      %p242 = scmp.eq.s32.totalorder %s26, 0
      %p243 = por %p241, %p242
      %p244 = scmp.ne.s32.totalorder %s230, %s231
      %p245 = scmp.eq.s32.totalorder %s27, 1
      %p246 = por %p244, %p245
      %p248 = scmp.ne.s32.totalorder %s231, %s247
      %p249 = scmp.eq.s32.totalorder %s27, 0
      %p250 = por %p248, %p249
      %s252 = sadd.s32 %s251, 1
      %p255 = scmp.eq.s32.totalorder %s21, 1
      %p256 = scmp.ne.s32.totalorder %s251, %s253
      %p257 = scmp.eq.s32.totalorder %s21, 0
      %p258 = por %p256, %p257
      %p259 = scmp.ne.s32.totalorder %s251, %s253
      %p260 = scmp.eq.s32.totalorder %s26, 1
      %p261 = por %p259, %p260
      %p262 = scmp.ne.s32.totalorder %s253, %s254
      %p263 = scmp.eq.s32.totalorder %s26, 0
      %p264 = por %p262, %p263
      %p265 = scmp.ne.s32.totalorder %s253, %s254
      %p266 = scmp.eq.s32.totalorder %s27, 1
      %p267 = por %p265, %p266
      %p269 = scmp.ne.s32.totalorder %s254, %s268
      %p270 = scmp.eq.s32.totalorder %s27, 0
      %p271 = por %p269, %p270
      %p272 = scmp.le.s32.totalorder 1, %s21
      %p273 = scmp.lt.s32.totalorder %s21, 3
      %p274 = pnand %p272, %p273
      %p275 = pneg %p274
      // Predicated region
      $region9: #{tpu_custom_call.1} parent=5 // pred_check
        _
      $region10: #{tpu_custom_call.1} parent=5 // pred_check_branch
        %277 = sbr.rel (%p274) target = $region12
      $region11: #{tpu_custom_call.1} parent=5 // pred_region
        %s278 = ssub.s32 %s21, 1
        // Predicated region
        $region13: #{tpu_custom_call.1} parent=11 // pred_check
          %p279 = pneg %p87
        $region14: #{tpu_custom_call.1} parent=11 // pred_check_branch
          %281 = sbr.rel (%p279) target = $region16
        $region15: #{tpu_custom_call.1} parent=11 // pred_region
          %p282 = scmp.lt.s32.totalorder %s31, 0
          %s283 = scalar_select %p282, %s31, 0
          %s284 = smul.addr %s283, 8
          %s285 = scalar_lea.vmem %s4, %s284
        $region16: #{tpu_custom_call.1} parent=11 // pred_fallthru
          _
      $region12: #{tpu_custom_call.1} parent=5 // pred_fallthru
        _
      %p286 = scmp.lt.s32.totalorder %s21, 2
      // Predicated region
      $region17: #{tpu_custom_call.1} parent=5 // pred_check
        %p287 = pneg %p286
      $region18: #{tpu_custom_call.1} parent=5 // pred_check_branch
        %289 = sbr.rel (%p287) target = $region20
      $region19: #{tpu_custom_call.1} parent=5 // pred_region
        // Predicated region
        $region21: #{tpu_custom_call.1} parent=19 // pred_check
          %p290 = pneg %p55
        $region22: #{tpu_custom_call.1} parent=19 // pred_check_branch
          %292 = sbr.rel (%p290) target = $region24
        $region23: #{tpu_custom_call.1} parent=19 // pred_region
          %s293 = smul.u32 16, %s29
          %p294 = scmp.lt.s32.totalorder %s28, 1
          %s295 = scalar_select %p294, %s28, 1
          %p296 = scmp.lt.s32.totalorder %s293, 15
          %s297 = scalar_select %p296, %s293, 15
          %s298 = smul.addr %s295, 16
          %s299 = sadd.s32 %s297, %s298
          %s300 = smul.addr %s299, 8
          %s301 = scalar_lea.vmem %s3, %s300
          %s302 = smul.u32 16, %s29
        $region24: #{tpu_custom_call.1} parent=19 // pred_fallthru
          _
        // Predicated region
        $region25: #{tpu_custom_call.1} parent=19 // pred_check
          %p303 = pneg %p107
        $region26: #{tpu_custom_call.1} parent=19 // pred_check_branch
          %305 = sbr.rel (%p303) target = $region28
        $region27: #{tpu_custom_call.1} parent=19 // pred_region
          %p306 = scmp.lt.s32.totalorder %s28, 1
          %s307 = scalar_select %p306, %s28, 1
          %s308 = smul.addr %s307, 16
          %s309 = smul.addr %s308, 8
          %s310 = scalar_lea.vmem %s5, %s309
        $region28: #{tpu_custom_call.1} parent=19 // pred_fallthru
          _
        // Predicated region
        $region29: #{tpu_custom_call.1} parent=19 // pred_check
          %p311 = pneg %p133
        $region30: #{tpu_custom_call.1} parent=19 // pred_check_branch
          %313 = sbr.rel (%p311) target = $region32
        $region31: #{tpu_custom_call.1} parent=19 // pred_region
          %p314 = scmp.lt.s32.totalorder %s28, 1
          %s315 = scalar_select %p314, %s28, 1
          %s316 = scalar_lea.vmem %s6, %s315
        $region32: #{tpu_custom_call.1} parent=19 // pred_fallthru
          _
        // Predicated region
        $region33: #{tpu_custom_call.1} parent=19 // pred_check
          %p317 = pneg %p159
        $region34: #{tpu_custom_call.1} parent=19 // pred_check_branch
          %319 = sbr.rel (%p317) target = $region36
        $region35: #{tpu_custom_call.1} parent=19 // pred_region
          %s320 = sand.u32 %s149, 1
          %s321 = scalar_lea.sflag [#allocation10], %s320
          %s322 = sand.u32 %s149, 1
          %s323 = smul.addr %s322, 128
          %s324 = scalar_lea.vmem [#allocation9], %s323
          %s326 = ssub.s32 2048, 2048
          %327 = vsyncadd %s321, %s326
          %s328 = smul.addr %s28, 16
          %s329 = smul.addr %s328, 128
          %s330 = scalar_lea.hbm %s7, %s329
          %s331 = sshll.u32 %s324, 4
          %s332 = int_to_ptr.vmem [resolvable:$true] %s331
          %337 = dma.hbm_to_vmem [thread:$0]  %s330, 2048, %s332, %s321, 128, 128, 8
        $region36: #{tpu_custom_call.1} parent=19 // pred_fallthru
          _
        // Predicated region
        $region37: #{tpu_custom_call.1} parent=19 // pred_check
          %p338 = pneg %p185
        $region38: #{tpu_custom_call.1} parent=19 // pred_check_branch
          %340 = sbr.rel (%p338) target = $region40
        $region39: #{tpu_custom_call.1} parent=19 // pred_region
          %p341 = scmp.lt.s32.totalorder %s28, 1
          %s342 = scalar_select %p341, %s28, 1
          %s343 = scalar_lea.vmem %s8, %s342
        $region40: #{tpu_custom_call.1} parent=19 // pred_fallthru
          _
        // Predicated region
        $region41: #{tpu_custom_call.1} parent=19 // pred_check
          %p344 = pneg %p211
        $region42: #{tpu_custom_call.1} parent=19 // pred_check_branch
          %346 = sbr.rel (%p344) target = $region44
        $region43: #{tpu_custom_call.1} parent=19 // pred_region
          %p347 = scmp.lt.s32.totalorder %s28, 1
          %s348 = scalar_select %p347, %s28, 1
          %s349 = scalar_lea.vmem %s9, %s348
        $region44: #{tpu_custom_call.1} parent=19 // pred_fallthru
          _
        // Predicated region
        $region45: #{tpu_custom_call.1} parent=19 // pred_check
          %p350 = pneg %p237
        $region46: #{tpu_custom_call.1} parent=19 // pred_check_branch
          %352 = sbr.rel (%p350) target = $region48
        $region47: #{tpu_custom_call.1} parent=19 // pred_region
          %p353 = scmp.lt.s32.totalorder %s28, 1
          %s354 = scalar_select %p353, %s28, 1
          %s355 = scalar_lea.vmem %s10, %s354
        $region48: #{tpu_custom_call.1} parent=19 // pred_fallthru
          _
      $region20: #{tpu_custom_call.1} parent=5 // pred_fallthru
        _
      %p356 = scmp.le.s32.totalorder 1, %s21
      %p357 = scmp.lt.s32.totalorder %s21, 3
      %p358 = pnand %p356, %p357
      %p359 = pneg %p358
      // Predicated region
      $region49: #{tpu_custom_call.1} parent=5 // pred_check
        _
      $region50: #{tpu_custom_call.1} parent=5 // pred_check_branch
        %361 = sbr.rel (%p358) target = $region52
      $region51: #{tpu_custom_call.1} parent=5 // pred_region
        %s362 = ssub.s32 %s21, 1
        %s363 = sand.u32 %s152, 1
        %s364 = scalar_lea.sflag [#allocation10], %s363
        %s365 = sand.u32 %s152, 1
        %s366 = smul.addr %s365, 128
        %s367 = scalar_lea.vmem [#allocation9], %s366
        // Predicated region
        $region53: #{tpu_custom_call.1} parent=51 // pred_check
          %p368 = pneg %p165
        $region54: #{tpu_custom_call.1} parent=51 // pred_check_branch
          %370 = sbr.rel (%p368) target = $region56
        $region55: #{tpu_custom_call.1} parent=51 // pred_region
          %371 = dma.done %s364, 2048
        $region56: #{tpu_custom_call.1} parent=51 // pred_fallthru
          _
        %s372 = smul.u32 16, %s31
        %p373 = scmp.lt.s32.totalorder %s30, 1
        %s374 = scalar_select %p373, %s30, 1
        %p375 = scmp.lt.s32.totalorder %s372, 15
        %s376 = scalar_select %p375, %s372, 15
        %s377 = smul.addr %s374, 16
        %s378 = sadd.s32 %s376, %s377
        %s379 = smul.addr %s378, 8
        %s380 = scalar_lea.vmem %s3, %s379
        %p381 = pneg %p61
        %p382 = pneg %p58
        %p383 = scmp.lt.s32.totalorder %s31, 0
        %s384 = scalar_select %p383, %s31, 0
        %s385 = smul.addr %s384, 8
        %s386 = scalar_lea.vmem %s4, %s385
        %p387 = pneg %p87
        %p388 = pneg %p84
        %p389 = scmp.lt.s32.totalorder %s30, 1
        %s390 = scalar_select %p389, %s30, 1
        %s391 = smul.addr %s390, 16
        %s392 = smul.addr %s391, 8
        %s393 = scalar_lea.vmem %s5, %s392
        %p394 = pneg %p113
        %p395 = pneg %p110
        %p396 = scmp.lt.s32.totalorder %s30, 1
        %s397 = scalar_select %p396, %s30, 1
        %s398 = scalar_lea.vmem %s6, %s397
        %p399 = pneg %p139
        %p400 = pneg %p136
        %s401 = sand.u32 %s152, 1
        %s402 = scalar_lea.sflag [#allocation10], %s401
        %s403 = sand.u32 %s152, 1
        %s404 = smul.addr %s403, 128
        %s405 = scalar_lea.vmem [#allocation9], %s404
        %p406 = pneg %p165
        %p407 = pneg %p162
        %p408 = scmp.lt.s32.totalorder %s30, 1
        %s409 = scalar_select %p408, %s30, 1
        %s410 = scalar_lea.vmem %s8, %s409
        %p411 = pneg %p191
        %p412 = pneg %p188
        %p413 = scmp.lt.s32.totalorder %s30, 1
        %s414 = scalar_select %p413, %s30, 1
        %s415 = scalar_lea.vmem %s9, %s414
        %p416 = pneg %p217
        %p417 = pneg %p214
        %p418 = scmp.lt.s32.totalorder %s30, 1
        %s419 = scalar_select %p418, %s30, 1
        %s420 = scalar_lea.vmem %s10, %s419
        %p421 = pneg %p243
        %p422 = pneg %p240
        %p423 = pneg %p264
        %p424 = pneg %p261
        %s425 = smul.u32 16, %s31
        %p426 = scmp.lt.s32.totalorder %s30, 1
        %s427 = scalar_select %p426, %s30, 1
        %p428 = scmp.lt.s32.totalorder %s425, 15
        %s429 = scalar_select %p428, %s425, 15
        %s430 = smul.addr %s427, 16
        %s431 = sadd.s32 %s429, %s430
        %s432 = smul.addr %s431, 8
        %s433 = scalar_lea.vmem %s3, %s432
        %s434 = smul.u32 16, %s31
        %p435 = scmp.lt.s32.totalorder %s31, 0
        %s436 = scalar_select %p435, %s31, 0
        %s437 = smul.addr %s436, 8
        %s438 = scalar_lea.vmem %s4, %s437
        %p439 = scmp.lt.s32.totalorder %s30, 1
        %s440 = scalar_select %p439, %s30, 1
        %s441 = smul.addr %s440, 16
        %s442 = smul.addr %s441, 8
        %s443 = scalar_lea.vmem %s5, %s442
        %p444 = scmp.lt.s32.totalorder %s30, 1
        %s445 = scalar_select %p444, %s30, 1
        %s446 = scalar_lea.vmem %s6, %s445
        %p447 = scmp.lt.s32.totalorder %s30, 1
        %s448 = scalar_select %p447, %s30, 1
        %s449 = scalar_lea.vmem %s8, %s448
        %p450 = scmp.lt.s32.totalorder %s30, 1
        %s451 = scalar_select %p450, %s30, 1
        %s452 = scalar_lea.vmem %s9, %s451
        %p453 = scmp.lt.s32.totalorder %s30, 1
        %s454 = scalar_select %p453, %s30, 1
        %s455 = scalar_lea.vmem %s10, %s454
        %p457 = scmp.eq.s32.totalorder %s30, 0
        %p458 = scmp.eq.s32.totalorder %s31, 0
        %p459 = pnand %p457, %p458
        %p460 = pneg %p459
        // Predicated region
        $region57: #{tpu_custom_call.1} parent=51 // pred_check
          _
        $region58: #{tpu_custom_call.1} parent=51 // pred_check_branch
          %462 = sbr.rel (%p459) target = $region60
        $region59: #{tpu_custom_call.1} parent=51 // pred_region
          %p464 = scmp.lt.u32.totalorder 64, 8
          %p465 = pneg %p464
          // Predicated region
          $region61: #{tpu_custom_call.1} parent=59 // pred_check
            _
          $region62: #{tpu_custom_call.1} parent=59 // pred_check_branch
            %467 = sbr.rel (%p464) target = $region64
          $region63: #{tpu_custom_call.1} parent=59 // pred_region
            %s482 = sand.u32 64, 7
            %p483 = scmp.eq.s32.totalorder %s482, 0
            // Predicated region
            $region76: #{tpu_custom_call.1} parent=63 // pred_check
              %p484 = pneg %p483
            $region77: #{tpu_custom_call.1} parent=63 // pred_check_branch
              %486 = sbr.rel (%p484) target = $region79
            $region78: #{tpu_custom_call.1} parent=63 // pred_region
              loop: start=0, step=1, limit=1
              $region80: #{tpu_custom_call.1} parent=78 // loop_pre_header
                _
              $region81: #{tpu_custom_call.1} parent=78 // loop_header
                %s488 = sphi 0, %s492
                %p489 = scmp.ge.s32.totalorder %s488, 1
                %s493 = sphi %s0, %s0
                %s494 = sphi [#allocation3], [#allocation3]
              $region82: #{tpu_custom_call.1} parent=78 // loop_header_branch
                %491 = sbr.rel (%p489) target = $region86
              $region83: #{tpu_custom_call.1} parent=78 // loop_body
                %v495 = vld [vmem:[%s493] sm:$0xff]
                %496 = vst [vmem:[%s494] sm:$0xff] %v495
                %v497 = vld [vmem:[%s493 + $0x8] sm:$0xff]
                %498 = vst [vmem:[%s494 + $0x8] sm:$0xff] %v497
                %v499 = vld [vmem:[%s493 + $0x10] sm:$0xff]
                %500 = vst [vmem:[%s494 + $0x10] sm:$0xff] %v499
                %v501 = vld [vmem:[%s493 + $0x18] sm:$0xff]
                %502 = vst [vmem:[%s494 + $0x18] sm:$0xff] %v501
                %v503 = vld [vmem:[%s493 + $0x20] sm:$0xff]
                %504 = vst [vmem:[%s494 + $0x20] sm:$0xff] %v503
                %v505 = vld [vmem:[%s493 + $0x28] sm:$0xff]
                %506 = vst [vmem:[%s494 + $0x28] sm:$0xff] %v505
                %v507 = vld [vmem:[%s493 + $0x30] sm:$0xff]
                %508 = vst [vmem:[%s494 + $0x30] sm:$0xff] %v507
                %v509 = vld [vmem:[%s493 + $0x38] sm:$0xff]
                %510 = vst [vmem:[%s494 + $0x38] sm:$0xff] %v509
              $region84: #{tpu_custom_call.1} parent=78 // loop_footer
                %s492 = sadd.s32 1, %s488
              $region85: #{tpu_custom_call.1} parent=78 // loop_footer_branch
                %487 = sbr.rel target = $region81
              $region86: #{tpu_custom_call.1} parent=78 // loop_exit
                _
            $region79: #{tpu_custom_call.1} parent=63 // pred_fallthru
              _
            %p511 = pneg %p483
            // Predicated region
            $region87: #{tpu_custom_call.1} parent=63 // pred_check
              _
            $region88: #{tpu_custom_call.1} parent=63 // pred_check_branch
              %513 = sbr.rel (%p483) target = $region90
            $region89: #{tpu_custom_call.1} parent=63 // pred_region
              %s514 = sand.u32 64, 7
            $region90: #{tpu_custom_call.1} parent=63 // pred_fallthru
              _
          $region64: #{tpu_custom_call.1} parent=59 // pred_fallthru
            _
          // Predicated region
          $region65: #{tpu_custom_call.1} parent=59 // pred_check
            %p468 = pneg %p464
          $region66: #{tpu_custom_call.1} parent=59 // pred_check_branch
            %470 = sbr.rel (%p468) target = $region68
          $region67: #{tpu_custom_call.1} parent=59 // pred_region
            %s471 = sshllo.u32 0, 64
            loop: start=0, step=1, limit=1
            $region69: #{tpu_custom_call.1} parent=67 // loop_pre_header
              _
            $region70: #{tpu_custom_call.1} parent=67 // loop_header
              %s473 = sphi 0, %s477
              %p474 = scmp.ge.s32.totalorder %s473, 1
              %s478 = sphi %s0, %s0
              %s479 = sphi [#allocation3], [#allocation3]
            $region71: #{tpu_custom_call.1} parent=67 // loop_header_branch
              %476 = sbr.rel (%p474) target = $region75
            $region72: #{tpu_custom_call.1} parent=67 // loop_body
              %v480 = vld [vmem:[%s478] sm:%s471]
              %481 = vst [vmem:[%s479] sm:%s471] %v480
            $region73: #{tpu_custom_call.1} parent=67 // loop_footer
              %s477 = sadd.s32 1, %s473
            $region74: #{tpu_custom_call.1} parent=67 // loop_footer_branch
              %472 = sbr.rel target = $region70
            $region75: #{tpu_custom_call.1} parent=67 // loop_exit
              _
          $region68: #{tpu_custom_call.1} parent=59 // pred_fallthru
            _
          // Predicated region
          $region91: #{tpu_custom_call.1} parent=59 // pred_check
            _
          $region92: #{tpu_custom_call.1} parent=59 // pred_check_branch
            %517 = sbr.rel (0) target = $region94
          $region93: #{tpu_custom_call.1} parent=59 // pred_region
            %518 = vsyncadd [#allocation8], 1024
          $region94: #{tpu_custom_call.1} parent=59 // pred_fallthru
            _
          %s519 = scalar_lea.sflag [#allocation8], 1
          // Predicated region
          $region95: #{tpu_custom_call.1} parent=59 // pred_check
            _
          $region96: #{tpu_custom_call.1} parent=59 // pred_check_branch
            %521 = sbr.rel target = $region98
          $region97: #{tpu_custom_call.1} parent=59 // pred_region
            %522 = sst [smem:[#allocation16]] [#allocation15]
            %523 = sst [smem:[#allocation17]] [#allocation14]
          $region98: #{tpu_custom_call.1} parent=59 // pred_fallthru
            _
          %525 = shalt.err (0)
          %s527 = sshll.u32 [#allocation4], 4
          %s528 = int_to_ptr.vmem [resolvable:$true] %s527
          %530 = dma.hbm_to_vmem [thread:$0]  %s1, 1024, %s528, %s519
          %s531 = scalar_lea.sflag [#allocation8], 2
          // Predicated region
          $region99: #{tpu_custom_call.1} parent=59 // pred_check
            _
          $region100: #{tpu_custom_call.1} parent=59 // pred_check_branch
            %533 = sbr.rel target = $region102
          $region101: #{tpu_custom_call.1} parent=59 // pred_region
            %534 = sst [smem:[#allocation16]] [#allocation19]
            %535 = sst [smem:[#allocation17]] [#allocation18]
          $region102: #{tpu_custom_call.1} parent=59 // pred_fallthru
            _
          %537 = shalt.err (0)
          %s539 = sshll.u32 [#allocation2], 4
          %s540 = int_to_ptr.vmem [resolvable:$true] %s539
          %542 = dma.hbm_to_vmem [thread:$0]  %s2, 1024, %s540, %s531
          %s543 = smul.u32 4, 16
          %s544 = smul.u32 %s543, 1
          %s545 = sshll.u32 %s544, 4
          %546 = dma.done %s531, %s545
          %s547 = sshll.u32 %s544, 4
          %548 = dma.done [#allocation8], %s547
          %s549 = sshll.u32 %s544, 4
          %550 = dma.done %s519, %s549
        $region60: #{tpu_custom_call.1} parent=51 // pred_fallthru
          _
        // Predicated region
        $region103: #{tpu_custom_call.1} parent=51 // pred_check
          %p551 = pneg %p458
        $region104: #{tpu_custom_call.1} parent=51 // pred_check_branch
          %553 = sbr.rel (%p551) target = $region106
        $region105: #{tpu_custom_call.1} parent=51 // pred_region
          %554 = vst [vmem:[#allocation7] sm:$0x3] 0.0
        $region106: #{tpu_custom_call.1} parent=51 // pred_fallthru
          _
        %p555 = scmp.eq.s32.totalorder %s30, 1
        %p556 = pnand %p555, %p458
        %p557 = pneg %p556
        // Predicated region
        $region107: #{tpu_custom_call.1} parent=51 // pred_check
          _
        $region108: #{tpu_custom_call.1} parent=51 // pred_check_branch
          %559 = sbr.rel (%p556) target = $region110
        $region109: #{tpu_custom_call.1} parent=51 // pred_region
          %560 = vst [vmem:[#allocation6] sm:$0xff] 0.0
        $region110: #{tpu_custom_call.1} parent=51 // pred_fallthru
          _
        %s561 = smul.u32 %s31, 128
        %s562 = sshra.s32 %s561, 4
        %s563 = sand.u32 %s561, 15
        %s564 = smul.addr %s562, 8
        %s565 = scalar_lea.vmem [#allocation2], %s564
        %v566 = vld [vmem:[%s565] sm:$0xff]
        %v567 = vld [vmem:[%s565 + $0x8] sm:$0xff]
        %v568 = vld [vmem:[%s565 + $0x10] sm:$0xff]
        %v569 = vld [vmem:[%s565 + $0x18] sm:$0xff]
        %v570 = vld [vmem:[%s565 + $0x20] sm:$0xff]
        %v571 = vld [vmem:[%s565 + $0x28] sm:$0xff]
        %v572 = vld [vmem:[%s565 + $0x30] sm:$0xff]
        %v573 = vld [vmem:[%s565 + $0x38] sm:$0xff]
        %v574 = vld [vmem:[#allocation3] sm:$0xff]
        %v575 = vld [vmem:[#allocation3 + $0x8] sm:$0xff]
        %v576 = vld [vmem:[#allocation3 + $0x10] sm:$0xff]
        %v577 = vld [vmem:[#allocation3 + $0x18] sm:$0xff]
        %v578 = vld [vmem:[#allocation3 + $0x20] sm:$0xff]
        %v579 = vld [vmem:[#allocation3 + $0x28] sm:$0xff]
        %v580 = vld [vmem:[#allocation3 + $0x30] sm:$0xff]
        %v581 = vld [vmem:[#allocation3 + $0x38] sm:$0xff]
        %v582 = vld [vmem:[#allocation4] sm:$0xff]
        %v583 = vld [vmem:[#allocation4 + $0x8] sm:$0xff]
        %v584 = vld [vmem:[#allocation4 + $0x10] sm:$0xff]
        %v585 = vld [vmem:[#allocation4 + $0x18] sm:$0xff]
        %v586 = vld [vmem:[#allocation4 + $0x20] sm:$0xff]
        %v587 = vld [vmem:[#allocation4 + $0x28] sm:$0xff]
        %v588 = vld [vmem:[#allocation4 + $0x30] sm:$0xff]
        %v589 = vld [vmem:[#allocation4 + $0x38] sm:$0xff]
        %590 = vmatprep.subr.bf16.mxu0 0
        %591 = vmatpush1.bf16.msra.mxu0 %v582
        %592 = vmatprep.subr.bf16.mxu0 0
        %593 = vmatpush1.bf16.msra.mxu0 %v583
        %594 = vmatprep.subr.bf16.mxu0 0
        %595 = vmatpush1.bf16.msra.mxu0 %v584
        %596 = vmatprep.subr.bf16.mxu0 0
        %597 = vmatpush1.bf16.msra.mxu0 %v585
        %598 = vmatprep.subr.bf16.mxu0 0
        %599 = vmatpush1.bf16.msra.mxu0 %v586
        %600 = vmatprep.subr.bf16.mxu0 0
        %601 = vmatpush1.bf16.msra.mxu0 %v587
        %602 = vmatprep.subr.bf16.mxu0 0
        %603 = vmatpush1.bf16.msra.mxu0 %v588
        %604 = vmatprep.subr.bf16.mxu0 0
        %605 = vmatpush1.bf16.msra.mxu0 %v589
        %606 = vmatprep.subr.bf16.mxu0 0
        %607 = vmatpush1.bf16.msra.mxu0 0
        %608 = vmatprep.subr.bf16.mxu0 0
        %609 = vmatpush1.bf16.msra.mxu0 0
        %610 = vmatprep.subr.bf16.mxu0 0
        %611 = vmatpush1.bf16.msra.mxu0 0
        %612 = vmatprep.subr.bf16.mxu0 0
        %613 = vmatpush1.bf16.msra.mxu0 0
        %614 = vmatprep.subr.bf16.mxu0 0
        %615 = vmatpush1.bf16.msra.mxu0 0
        %616 = vmatprep.subr.bf16.mxu0 0
        %617 = vmatpush1.bf16.msra.mxu0 0
        %618 = vmatprep.subr.bf16.mxu0 0
        %619 = vmatpush1.bf16.msra.mxu0 0
        %620 = vmatprep.subr.bf16.mxu0 0
        %621 = vmatpush1.bf16.msra.mxu0 0
        %622 = vmatprep.mubr.bf16.mxu0 0
        %623 = vmatmul.mubr.bf16.gmra.mrb[0].mxu0 %v566
        %v624 = vpop.f32.mrb[0].mxu0
        %v625 = vadd.f32 0.0, %v624
        %v626 = vpop.f32.mrb[0].mxu0
        %v627 = vpop.f32.mrb[0].mxu0
        %v628 = vadd.f32 0.0, %v627
        %v629 = vpop.f32.mrb[0].mxu0
        %630 = vmatprep.mubr.bf16.mxu0 0
        %631 = vmatmul.mubr.bf16.gmra.mrb[0].mxu0 %v567
        %v632 = vpop.f32.mrb[0].mxu0
        %v633 = vadd.f32 0.0, %v632
        %v634 = vpop.f32.mrb[0].mxu0
        %v635 = vpop.f32.mrb[0].mxu0
        %v636 = vadd.f32 0.0, %v635
        %v637 = vpop.f32.mrb[0].mxu0
        %638 = vmatprep.mubr.bf16.mxu0 0
        %639 = vmatmul.mubr.bf16.gmra.mrb[0].mxu0 %v568
        %v640 = vpop.f32.mrb[0].mxu0
        %v641 = vadd.f32 0.0, %v640
        %v642 = vpop.f32.mrb[0].mxu0
        %v643 = vpop.f32.mrb[0].mxu0
        %v644 = vadd.f32 0.0, %v643
        %v645 = vpop.f32.mrb[0].mxu0
        %646 = vmatprep.mubr.bf16.mxu0 0
        %647 = vmatmul.mubr.bf16.gmra.mrb[0].mxu0 %v569
        %v648 = vpop.f32.mrb[0].mxu0
        %v649 = vadd.f32 0.0, %v648
        %v650 = vpop.f32.mrb[0].mxu0
        %v651 = vpop.f32.mrb[0].mxu0
        %v652 = vadd.f32 0.0, %v651
        %v653 = vpop.f32.mrb[0].mxu0
        %654 = vmatprep.mubr.bf16.mxu0 0
        %655 = vmatmul.mubr.bf16.gmra.mrb[0].mxu0 %v570
        %v656 = vpop.f32.mrb[0].mxu0
        %v657 = vadd.f32 0.0, %v656
        %v658 = vpop.f32.mrb[0].mxu0
        %v659 = vpop.f32.mrb[0].mxu0
        %v660 = vadd.f32 0.0, %v659
        %v661 = vpop.f32.mrb[0].mxu0
        %662 = vmatprep.mubr.bf16.mxu0 0
        %663 = vmatmul.mubr.bf16.gmra.mrb[0].mxu0 %v571
        %v664 = vpop.f32.mrb[0].mxu0
        %v665 = vadd.f32 0.0, %v664
        %v666 = vpop.f32.mrb[0].mxu0
        %v667 = vpop.f32.mrb[0].mxu0
        %v668 = vadd.f32 0.0, %v667
        %v669 = vpop.f32.mrb[0].mxu0
        %670 = vmatprep.mubr.bf16.mxu0 0
        %671 = vmatmul.mubr.bf16.gmra.mrb[0].mxu0 %v572
        %v672 = vpop.f32.mrb[0].mxu0
        %v673 = vadd.f32 0.0, %v672
        %v674 = vpop.f32.mrb[0].mxu0
        %v675 = vpop.f32.mrb[0].mxu0
        %v676 = vadd.f32 0.0, %v675
        %v677 = vpop.f32.mrb[0].mxu0
        %678 = vmatprep.mubr.bf16.mxu0 0
        %679 = vmatmul.mubr.bf16.gmra.mrb[0].mxu0 %v573
        %v680 = vpop.f32.mrb[0].mxu0
        %v681 = vadd.f32 0.0, %v680
        %v682 = vpop.f32.mrb[0].mxu0
        %v683 = vpop.f32.mrb[0].mxu0
        %v684 = vadd.f32 0.0, %v683
        %v685 = vpop.f32.mrb[0].mxu0
        %686 = vdwg.mxu0
        %687 = vmatprep.subr.bf16.mxu0 0
        %688 = vmatpush1.bf16.msra.mxu0 %v574
        %689 = vmatprep.subr.bf16.mxu0 0
        %690 = vmatpush1.bf16.msra.mxu0 %v575
        %691 = vmatprep.subr.bf16.mxu0 0
        %692 = vmatpush1.bf16.msra.mxu0 %v576
        %693 = vmatprep.subr.bf16.mxu0 0
        %694 = vmatpush1.bf16.msra.mxu0 %v577
        %695 = vmatprep.subr.bf16.mxu0 0
        %696 = vmatpush1.bf16.msra.mxu0 %v578
        %697 = vmatprep.subr.bf16.mxu0 0
        %698 = vmatpush1.bf16.msra.mxu0 %v579
        %699 = vmatprep.subr.bf16.mxu0 0
        %700 = vmatpush1.bf16.msra.mxu0 %v580
        %701 = vmatprep.subr.bf16.mxu0 0
        %702 = vmatpush1.bf16.msra.mxu0 %v581
        %703 = vmatprep.subr.bf16.mxu0 0
        %704 = vmatpush1.bf16.msra.mxu0 0
        %705 = vmatprep.subr.bf16.mxu0 0
        %706 = vmatpush1.bf16.msra.mxu0 0
        %707 = vmatprep.subr.bf16.mxu0 0
        %708 = vmatpush1.bf16.msra.mxu0 0
        %709 = vmatprep.subr.bf16.mxu0 0
        %710 = vmatpush1.bf16.msra.mxu0 0
        %711 = vmatprep.subr.bf16.mxu0 0
        %712 = vmatpush1.bf16.msra.mxu0 0
        %713 = vmatprep.subr.bf16.mxu0 0
        %714 = vmatpush1.bf16.msra.mxu0 0
        %715 = vmatprep.subr.bf16.mxu0 0
        %716 = vmatpush1.bf16.msra.mxu0 0
        %717 = vmatprep.subr.bf16.mxu0 0
        %718 = vmatpush1.bf16.msra.mxu0 0
        %719 = vmatprep.mubr.bf16.mxu0 0
        %720 = vmatmul.mubr.bf16.gmra.mrb[0].mxu0 %v566
        %v721 = vpop.f32.mrb[0].mxu0
        %v722 = vadd.f32 %v625, %v721
        %v723 = vpop.f32.mrb[0].mxu0
        %v724 = vpop.f32.mrb[0].mxu0
        %v725 = vadd.f32 %v628, %v724
        %v726 = vpop.f32.mrb[0].mxu0
        %727 = vmatprep.mubr.bf16.mxu0 0
        %728 = vmatmul.mubr.bf16.gmra.mrb[0].mxu0 %v567
        %v729 = vpop.f32.mrb[0].mxu0
        %v730 = vadd.f32 %v633, %v729
        %v731 = vpop.f32.mrb[0].mxu0
        %v732 = vpop.f32.mrb[0].mxu0
        %v733 = vadd.f32 %v636, %v732
        %v734 = vpop.f32.mrb[0].mxu0
        %735 = vmatprep.mubr.bf16.mxu0 0
        %736 = vmatmul.mubr.bf16.gmra.mrb[0].mxu0 %v568
        %v737 = vpop.f32.mrb[0].mxu0
        %v738 = vadd.f32 %v641, %v737
        %v739 = vpop.f32.mrb[0].mxu0
        %v740 = vpop.f32.mrb[0].mxu0
        %v741 = vadd.f32 %v644, %v740
        %v742 = vpop.f32.mrb[0].mxu0
        %743 = vmatprep.mubr.bf16.mxu0 0
        %744 = vmatmul.mubr.bf16.gmra.mrb[0].mxu0 %v569
        %v745 = vpop.f32.mrb[0].mxu0
        %v746 = vadd.f32 %v649, %v745
        %v747 = vpop.f32.mrb[0].mxu0
        %v748 = vpop.f32.mrb[0].mxu0
        %v749 = vadd.f32 %v652, %v748
        %v750 = vpop.f32.mrb[0].mxu0
        %751 = vmatprep.mubr.bf16.mxu0 0
        %752 = vmatmul.mubr.bf16.gmra.mrb[0].mxu0 %v570
        %v753 = vpop.f32.mrb[0].mxu0
        %v754 = vadd.f32 %v657, %v753
        %v755 = vpop.f32.mrb[0].mxu0
        %v756 = vpop.f32.mrb[0].mxu0
        %v757 = vadd.f32 %v660, %v756
        %v758 = vpop.f32.mrb[0].mxu0
        %759 = vmatprep.mubr.bf16.mxu0 0
        %760 = vmatmul.mubr.bf16.gmra.mrb[0].mxu0 %v571
        %v761 = vpop.f32.mrb[0].mxu0
        %v762 = vadd.f32 %v665, %v761
        %v763 = vpop.f32.mrb[0].mxu0
        %v764 = vpop.f32.mrb[0].mxu0
        %v765 = vadd.f32 %v668, %v764
        %v766 = vpop.f32.mrb[0].mxu0
        %767 = vmatprep.mubr.bf16.mxu0 0
        %768 = vmatmul.mubr.bf16.gmra.mrb[0].mxu0 %v572
        %v769 = vpop.f32.mrb[0].mxu0
        %v770 = vadd.f32 %v673, %v769
        %v771 = vpop.f32.mrb[0].mxu0
        %v772 = vpop.f32.mrb[0].mxu0
        %v773 = vadd.f32 %v676, %v772
        %v774 = vpop.f32.mrb[0].mxu0
        %775 = vmatprep.mubr.bf16.mxu0 0
        %776 = vmatmul.mubr.bf16.gmra.mrb[0].mxu0 %v573
        %v777 = vpop.f32.mrb[0].mxu0
        %v778 = vadd.f32 %v681, %v777
        %v779 = vpop.f32.mrb[0].mxu0
        %v780 = vpop.f32.mrb[0].mxu0
        %v781 = vadd.f32 %v684, %v780
        %v782 = vpop.f32.mrb[0].mxu0
        %783 = vdwg.mxu0
        %v784 = vld [vmem:[%s443] sm:$0xff]
        %v785 = vld [vmem:[%s443 + $0x8] sm:$0xff]
        %v786 = vld [vmem:[%s443 + $0x10] sm:$0xff]
        %v787 = vld [vmem:[%s443 + $0x18] sm:$0xff]
        %v788 = vld [vmem:[%s443 + $0x20] sm:$0xff]
        %v789 = vld [vmem:[%s443 + $0x28] sm:$0xff]
        %v790 = vld [vmem:[%s443 + $0x30] sm:$0xff]
        %v791 = vld [vmem:[%s443 + $0x38] sm:$0xff]
        %v792 = vld [vmem:[%s443 + $0x40] sm:$0xff]
        %v793 = vld [vmem:[%s443 + $0x48] sm:$0xff]
        %v794 = vld [vmem:[%s443 + $0x50] sm:$0xff]
        %v795 = vld [vmem:[%s443 + $0x58] sm:$0xff]
        %v796 = vld [vmem:[%s443 + $0x60] sm:$0xff]
        %v797 = vld [vmem:[%s443 + $0x68] sm:$0xff]
        %v798 = vld [vmem:[%s443 + $0x70] sm:$0xff]
        %v799 = vld [vmem:[%s443 + $0x78] sm:$0xff]
        %v800 = vld [vmem:[%s433] sm:$0xff]
        %v801 = vld [vmem:[%s433 + $0x8] sm:$0xff]
        %v802 = vld [vmem:[%s433 + $0x10] sm:$0xff]
        %v803 = vld [vmem:[%s433 + $0x18] sm:$0xff]
        %v804 = vld [vmem:[%s433 + $0x20] sm:$0xff]
        %v805 = vld [vmem:[%s433 + $0x28] sm:$0xff]
        %v806 = vld [vmem:[%s433 + $0x30] sm:$0xff]
        %v807 = vld [vmem:[%s433 + $0x38] sm:$0xff]
        %v808 = vld [vmem:[%s433 + $0x40] sm:$0xff]
        %v809 = vld [vmem:[%s433 + $0x48] sm:$0xff]
        %v810 = vld [vmem:[%s433 + $0x50] sm:$0xff]
        %v811 = vld [vmem:[%s433 + $0x58] sm:$0xff]
        %v812 = vld [vmem:[%s433 + $0x60] sm:$0xff]
        %v813 = vld [vmem:[%s433 + $0x68] sm:$0xff]
        %v814 = vld [vmem:[%s433 + $0x70] sm:$0xff]
        %v815 = vld [vmem:[%s433 + $0x78] sm:$0xff]
        %vm816 = vcmask 261120
        %v818 = vsel %vm816, %v800, 0
        %v821 = vsel %vm816, %v801, 0
        %v824 = vsel %vm816, %v802, 0
        %v827 = vsel %vm816, %v803, 0
        %v830 = vsel %vm816, %v804, 0
        %v833 = vsel %vm816, %v805, 0
        %v836 = vsel %vm816, %v806, 0
        %v839 = vsel %vm816, %v807, 0
        %v842 = vsel %vm816, %v808, 0
        %v845 = vsel %vm816, %v809, 0
        %v848 = vsel %vm816, %v810, 0
        %v851 = vsel %vm816, %v811, 0
        %v854 = vsel %vm816, %v812, 0
        %v857 = vsel %vm816, %v813, 0
        %v860 = vsel %vm816, %v814, 0
        %v863 = vsel %vm816, %v815, 0
        %865 = vmatprep.subr.mxu0 0.0
        %866 = vmatpush1.msra.mxu0 %v784
        %867 = vmatprep.subr.mxu0 0.0
        %868 = vmatpush1.msra.mxu0 %v785
        %869 = vmatprep.subr.mxu0 0.0
        %870 = vmatpush1.msra.mxu0 %v786
        %871 = vmatprep.subr.mxu0 0.0
        %872 = vmatpush1.msra.mxu0 %v787
        %873 = vmatprep.subr.mxu0 0.0
        %874 = vmatpush1.msra.mxu0 0.0
        %875 = vmatprep.subr.mxu0 0.0
        %876 = vmatpush1.msra.mxu0 0.0
        %877 = vmatprep.subr.mxu0 0.0
        %878 = vmatpush1.msra.mxu0 0.0
        %879 = vmatprep.subr.mxu0 0.0
        %880 = vmatpush1.msra.mxu0 0.0
        %881 = vmatprep.subr.mxu0 0.0
        %882 = vmatpush1.msra.mxu0 0.0
        %883 = vmatprep.subr.mxu0 0.0
        %884 = vmatpush1.msra.mxu0 0.0
        %885 = vmatprep.subr.mxu0 0.0
        %886 = vmatpush1.msra.mxu0 0.0
        %887 = vmatprep.subr.mxu0 0.0
        %888 = vmatpush1.msra.mxu0 0.0
        %889 = vmatprep.subr.mxu0 0.0
        %890 = vmatpush1.msra.mxu0 0.0
        %891 = vmatprep.subr.mxu0 0.0
        %892 = vmatpush1.msra.mxu0 0.0
        %893 = vmatprep.subr.mxu0 0.0
        %894 = vmatpush1.msra.mxu0 0.0
        %895 = vmatprep.subr.mxu0 0.0
        %896 = vmatpush1.msra.mxu0 0.0
        %897 = vmatprep.subr.mxu0 0.0
        %898 = vmatpush1.msra.mxu0 0.0
        %899 = vmatprep.subr.mxu0 0.0
        %900 = vmatpush1.msra.mxu0 0.0
        %901 = vmatprep.subr.mxu0 0.0
        %902 = vmatpush1.msra.mxu0 0.0
        %903 = vmatprep.subr.mxu0 0.0
        %904 = vmatpush1.msra.mxu0 0.0
        %905 = vmatprep.subr.mxu0 0.0
        %906 = vmatpush1.msra.mxu0 0.0
        %907 = vmatprep.subr.mxu0 0.0
        %908 = vmatpush1.msra.mxu0 0.0
        %909 = vmatprep.subr.mxu0 0.0
        %910 = vmatpush1.msra.mxu0 0.0
        %911 = vmatprep.subr.mxu0 0.0
        %912 = vmatpush1.msra.mxu0 0.0
        %913 = vmatprep.subr.mxu0 0.0
        %914 = vmatpush1.msra.mxu0 0.0
        %915 = vmatprep.subr.mxu0 0.0
        %916 = vmatpush1.msra.mxu0 0.0
        %917 = vmatprep.subr.mxu0 0.0
        %918 = vmatpush1.msra.mxu0 0.0
        %919 = vmatprep.subr.mxu0 0.0
        %920 = vmatpush1.msra.mxu0 0.0
        %921 = vmatprep.subr.mxu0 0.0
        %922 = vmatpush1.msra.mxu0 0.0
        %923 = vmatprep.subr.mxu0 0.0
        %924 = vmatpush1.msra.mxu0 0.0
        %925 = vmatprep.subr.mxu0 0.0
        %926 = vmatpush1.msra.mxu0 0.0
        %927 = vmatprep.subr.mxu0 0.0
        %928 = vmatpush1.msra.mxu0 0.0
        %929 = vmatprep.mubr.f32.mxu0 0.0
        %930 = vmatmul.mubr.f32.gmra.mrb[0].mxu0 %v818
        %v931 = vpop.f32.mrb[0].mxu0
        %v932 = vadd.f32 0.0, %v931
        %v933 = vpop.f32.mrb[0].mxu0
        %934 = vmatprep.mubr.f32.mxu0 0.0
        %935 = vmatmul.mubr.f32.gmra.mrb[0].mxu0 %v821
        %v936 = vpop.f32.mrb[0].mxu0
        %v937 = vadd.f32 0.0, %v936
        %v938 = vpop.f32.mrb[0].mxu0
        %939 = vmatprep.mubr.f32.mxu0 0.0
        %940 = vmatmul.mubr.f32.gmra.mrb[0].mxu0 %v824
        %v941 = vpop.f32.mrb[0].mxu0
        %v942 = vadd.f32 0.0, %v941
        %v943 = vpop.f32.mrb[0].mxu0
        %944 = vmatprep.mubr.f32.mxu0 0.0
        %945 = vmatmul.mubr.f32.gmra.mrb[0].mxu0 %v827
        %v946 = vpop.f32.mrb[0].mxu0
        %v947 = vadd.f32 0.0, %v946
        %v948 = vpop.f32.mrb[0].mxu0
        %949 = vmatprep.mubr.f32.mxu0 0.0
        %950 = vmatmul.mubr.f32.gmra.mrb[0].mxu0 %v830
        %v951 = vpop.f32.mrb[0].mxu0
        %v952 = vadd.f32 0.0, %v951
        %v953 = vpop.f32.mrb[0].mxu0
        %954 = vmatprep.mubr.f32.mxu0 0.0
        %955 = vmatmul.mubr.f32.gmra.mrb[0].mxu0 %v833
        %v956 = vpop.f32.mrb[0].mxu0
        %v957 = vadd.f32 0.0, %v956
        %v958 = vpop.f32.mrb[0].mxu0
        %959 = vmatprep.mubr.f32.mxu0 0.0
        %960 = vmatmul.mubr.f32.gmra.mrb[0].mxu0 %v836
        %v961 = vpop.f32.mrb[0].mxu0
        %v962 = vadd.f32 0.0, %v961
        %v963 = vpop.f32.mrb[0].mxu0
        %964 = vmatprep.mubr.f32.mxu0 0.0
        %965 = vmatmul.mubr.f32.gmra.mrb[0].mxu0 %v839
        %v966 = vpop.f32.mrb[0].mxu0
        %v967 = vadd.f32 0.0, %v966
        %v968 = vpop.f32.mrb[0].mxu0
        %969 = vmatprep.mubr.f32.mxu0 0.0
        %970 = vmatmul.mubr.f32.gmra.mrb[0].mxu0 %v842
        %v971 = vpop.f32.mrb[0].mxu0
        %v972 = vadd.f32 0.0, %v971
        %v973 = vpop.f32.mrb[0].mxu0
        %974 = vmatprep.mubr.f32.mxu0 0.0
        %975 = vmatmul.mubr.f32.gmra.mrb[0].mxu0 %v845
        %v976 = vpop.f32.mrb[0].mxu0
        %v977 = vadd.f32 0.0, %v976
        %v978 = vpop.f32.mrb[0].mxu0
        %979 = vmatprep.mubr.f32.mxu0 0.0
        %980 = vmatmul.mubr.f32.gmra.mrb[0].mxu0 %v848
        %v981 = vpop.f32.mrb[0].mxu0
        %v982 = vadd.f32 0.0, %v981
        %v983 = vpop.f32.mrb[0].mxu0
        %984 = vmatprep.mubr.f32.mxu0 0.0
        %985 = vmatmul.mubr.f32.gmra.mrb[0].mxu0 %v851
        %v986 = vpop.f32.mrb[0].mxu0
        %v987 = vadd.f32 0.0, %v986
        %v988 = vpop.f32.mrb[0].mxu0
        %989 = vmatprep.mubr.f32.mxu0 0.0
        %990 = vmatmul.mubr.f32.gmra.mrb[0].mxu0 %v854
        %v991 = vpop.f32.mrb[0].mxu0
        %v992 = vadd.f32 0.0, %v991
        %v993 = vpop.f32.mrb[0].mxu0
        %994 = vmatprep.mubr.f32.mxu0 0.0
        %995 = vmatmul.mubr.f32.gmra.mrb[0].mxu0 %v857
        %v996 = vpop.f32.mrb[0].mxu0
        %v997 = vadd.f32 0.0, %v996
        %v998 = vpop.f32.mrb[0].mxu0
        %999 = vmatprep.mubr.f32.mxu0 0.0
        %1000 = vmatmul.mubr.f32.gmra.mrb[0].mxu0 %v860
        %v1001 = vpop.f32.mrb[0].mxu0
        %v1002 = vadd.f32 0.0, %v1001
        %v1003 = vpop.f32.mrb[0].mxu0
        %1004 = vmatprep.mubr.f32.mxu0 0.0
        %1005 = vmatmul.mubr.f32.gmra.mrb[0].mxu0 %v863
        %v1006 = vpop.f32.mrb[0].mxu0
        %v1007 = vadd.f32 0.0, %v1006
        %v1008 = vpop.f32.mrb[0].mxu0
        %1009 = vdwg.mxu0
        %1010 = vmatprep.subr.mxu0 0.0
        %1011 = vmatpush1.msra.mxu0 %v784
        %1012 = vmatprep.subr.mxu0 0.0
        %1013 = vmatpush1.msra.mxu0 %v785
        %1014 = vmatprep.subr.mxu0 0.0
        %1015 = vmatpush1.msra.mxu0 %v786
        %1016 = vmatprep.subr.mxu0 0.0
        %1017 = vmatpush1.msra.mxu0 %v787
        %1018 = vmatprep.subr.mxu0 0.0
        %1019 = vmatpush1.msra.mxu0 %v788
        %1020 = vmatprep.subr.mxu0 0.0
        %1021 = vmatpush1.msra.mxu0 %v789
        %1022 = vmatprep.subr.mxu0 0.0
        %1023 = vmatpush1.msra.mxu0 %v790
        %1024 = vmatprep.subr.mxu0 0.0
        %1025 = vmatpush1.msra.mxu0 %v791
        %1026 = vmatprep.subr.mxu0 0.0
        %1027 = vmatpush1.msra.mxu0 %v792
        %1028 = vmatprep.subr.mxu0 0.0
        %1029 = vmatpush1.msra.mxu0 %v793
        %1030 = vmatprep.subr.mxu0 0.0
        %1031 = vmatpush1.msra.mxu0 %v794
        %1032 = vmatprep.subr.mxu0 0.0
        %1033 = vmatpush1.msra.mxu0 %v795
        %1034 = vmatprep.subr.mxu0 0.0
        %1035 = vmatpush1.msra.mxu0 %v796
        %1036 = vmatprep.subr.mxu0 0.0
        %1037 = vmatpush1.msra.mxu0 %v797
        %1038 = vmatprep.subr.mxu0 0.0
        %1039 = vmatpush1.msra.mxu0 %v798
        %1040 = vmatprep.subr.mxu0 0.0
        %1041 = vmatpush1.msra.mxu0 %v799
        %1042 = vmatprep.subr.mxu0 0.0
        %1043 = vmatpush1.msra.mxu0 0.0
        %1044 = vmatprep.subr.mxu0 0.0
        %1045 = vmatpush1.msra.mxu0 0.0
        %1046 = vmatprep.subr.mxu0 0.0
        %1047 = vmatpush1.msra.mxu0 0.0
        %1048 = vmatprep.subr.mxu0 0.0
        %1049 = vmatpush1.msra.mxu0 0.0
        %1050 = vmatprep.subr.mxu0 0.0
        %1051 = vmatpush1.msra.mxu0 0.0
        %1052 = vmatprep.subr.mxu0 0.0
        %1053 = vmatpush1.msra.mxu0 0.0
        %1054 = vmatprep.subr.mxu0 0.0
        %1055 = vmatpush1.msra.mxu0 0.0
        %1056 = vmatprep.subr.mxu0 0.0
        %1057 = vmatpush1.msra.mxu0 0.0
        %1058 = vmatprep.subr.mxu0 0.0
        %1059 = vmatpush1.msra.mxu0 0.0
        %1060 = vmatprep.subr.mxu0 0.0
        %1061 = vmatpush1.msra.mxu0 0.0
        %1062 = vmatprep.subr.mxu0 0.0
        %1063 = vmatpush1.msra.mxu0 0.0
        %1064 = vmatprep.subr.mxu0 0.0
        %1065 = vmatpush1.msra.mxu0 0.0
        %1066 = vmatprep.subr.mxu0 0.0
        %1067 = vmatpush1.msra.mxu0 0.0
        %1068 = vmatprep.subr.mxu0 0.0
        %1069 = vmatpush1.msra.mxu0 0.0
        %1070 = vmatprep.subr.mxu0 0.0
        %1071 = vmatpush1.msra.mxu0 0.0
        %1072 = vmatprep.subr.mxu0 0.0
        %1073 = vmatpush1.msra.mxu0 0.0
        %1074 = vmatprep.mubr.f32.mxu0 0.0
        %1075 = vmatmul.mubr.f32.gmra.mrb[0].mxu0 %v722
        %v1076 = vpop.f32.mrb[0].mxu0
        %v1077 = vadd.f32 %v932, %v1076
        %v1078 = vpop.f32.mrb[0].mxu0
        %1079 = vmatprep.mubr.f32.mxu0 0.0
        %1080 = vmatmul.mubr.f32.gmra.mrb[0].mxu0 %v725
        %v1081 = vpop.f32.mrb[0].mxu0
        %v1082 = vadd.f32 %v937, %v1081
        %v1083 = vpop.f32.mrb[0].mxu0
        %1084 = vmatprep.mubr.f32.mxu0 0.0
        %1085 = vmatmul.mubr.f32.gmra.mrb[0].mxu0 %v730
        %v1086 = vpop.f32.mrb[0].mxu0
        %v1087 = vadd.f32 %v942, %v1086
        %v1088 = vpop.f32.mrb[0].mxu0
        %1089 = vmatprep.mubr.f32.mxu0 0.0
        %1090 = vmatmul.mubr.f32.gmra.mrb[0].mxu0 %v733
        %v1091 = vpop.f32.mrb[0].mxu0
        %v1092 = vadd.f32 %v947, %v1091
        %v1093 = vpop.f32.mrb[0].mxu0
        %1094 = vmatprep.mubr.f32.mxu0 0.0
        %1095 = vmatmul.mubr.f32.gmra.mrb[0].mxu0 %v738
        %v1096 = vpop.f32.mrb[0].mxu0
        %v1097 = vadd.f32 %v952, %v1096
        %v1098 = vpop.f32.mrb[0].mxu0
        %1099 = vmatprep.mubr.f32.mxu0 0.0
        %1100 = vmatmul.mubr.f32.gmra.mrb[0].mxu0 %v741
        %v1101 = vpop.f32.mrb[0].mxu0
        %v1102 = vadd.f32 %v957, %v1101
        %v1103 = vpop.f32.mrb[0].mxu0
        %1104 = vmatprep.mubr.f32.mxu0 0.0
        %1105 = vmatmul.mubr.f32.gmra.mrb[0].mxu0 %v746
        %v1106 = vpop.f32.mrb[0].mxu0
        %v1107 = vadd.f32 %v962, %v1106
        %v1108 = vpop.f32.mrb[0].mxu0
        %1109 = vmatprep.mubr.f32.mxu0 0.0
        %1110 = vmatmul.mubr.f32.gmra.mrb[0].mxu0 %v749
        %v1111 = vpop.f32.mrb[0].mxu0
        %v1112 = vadd.f32 %v967, %v1111
        %v1113 = vpop.f32.mrb[0].mxu0
        %1114 = vmatprep.mubr.f32.mxu0 0.0
        %1115 = vmatmul.mubr.f32.gmra.mrb[0].mxu0 %v754
        %v1116 = vpop.f32.mrb[0].mxu0
        %v1117 = vadd.f32 %v972, %v1116
        %v1118 = vpop.f32.mrb[0].mxu0
        %1119 = vmatprep.mubr.f32.mxu0 0.0
        %1120 = vmatmul.mubr.f32.gmra.mrb[0].mxu0 %v757
        %v1121 = vpop.f32.mrb[0].mxu0
        %v1122 = vadd.f32 %v977, %v1121
        %v1123 = vpop.f32.mrb[0].mxu0
        %1124 = vmatprep.mubr.f32.mxu0 0.0
        %1125 = vmatmul.mubr.f32.gmra.mrb[0].mxu0 %v762
        %v1126 = vpop.f32.mrb[0].mxu0
        %v1127 = vadd.f32 %v982, %v1126
        %v1128 = vpop.f32.mrb[0].mxu0
        %1129 = vmatprep.mubr.f32.mxu0 0.0
        %1130 = vmatmul.mubr.f32.gmra.mrb[0].mxu0 %v765
        %v1131 = vpop.f32.mrb[0].mxu0
        %v1132 = vadd.f32 %v987, %v1131
        %v1133 = vpop.f32.mrb[0].mxu0
        %1134 = vmatprep.mubr.f32.mxu0 0.0
        %1135 = vmatmul.mubr.f32.gmra.mrb[0].mxu0 %v770
        %v1136 = vpop.f32.mrb[0].mxu0
        %v1137 = vadd.f32 %v992, %v1136
        %v1138 = vpop.f32.mrb[0].mxu0
        %1139 = vmatprep.mubr.f32.mxu0 0.0
        %1140 = vmatmul.mubr.f32.gmra.mrb[0].mxu0 %v773
        %v1141 = vpop.f32.mrb[0].mxu0
        %v1142 = vadd.f32 %v997, %v1141
        %v1143 = vpop.f32.mrb[0].mxu0
        %1144 = vmatprep.mubr.f32.mxu0 0.0
        %1145 = vmatmul.mubr.f32.gmra.mrb[0].mxu0 %v778
        %v1146 = vpop.f32.mrb[0].mxu0
        %v1147 = vadd.f32 %v1002, %v1146
        %v1148 = vpop.f32.mrb[0].mxu0
        %1149 = vmatprep.mubr.f32.mxu0 0.0
        %1150 = vmatmul.mubr.f32.gmra.mrb[0].mxu0 %v781
        %v1151 = vpop.f32.mrb[0].mxu0
        %v1152 = vadd.f32 %v1007, %v1151
        %v1153 = vpop.f32.mrb[0].mxu0
        %1154 = vdwg.mxu0
        %v1155 = vld [vmem:[%s446] sm:$0x1]
        %v1157 = vlaneseq
        %v1158 = vshrl.u32 %v1157, 7
        %v1159 = vsub.s32 0, %v1158
        %v1160 = vrot.slane %v1155, %v1159
        %v1162 = vadd.f32 %v1077, %v1160
        %v1163 = vadd.f32 %v1082, %v1160
        %v1164 = vadd.f32 %v1087, %v1160
        %v1165 = vadd.f32 %v1092, %v1160
        %v1166 = vadd.f32 %v1097, %v1160
        %v1167 = vadd.f32 %v1102, %v1160
        %v1168 = vadd.f32 %v1107, %v1160
        %v1169 = vadd.f32 %v1112, %v1160
        %v1170 = vadd.f32 %v1117, %v1160
        %v1171 = vadd.f32 %v1122, %v1160
        %v1172 = vadd.f32 %v1127, %v1160
        %v1173 = vadd.f32 %v1132, %v1160
        %v1174 = vadd.f32 %v1137, %v1160
        %v1175 = vadd.f32 %v1142, %v1160
        %v1176 = vadd.f32 %v1147, %v1160
        %v1177 = vadd.f32 %v1152, %v1160
        %v1178 = vmax.f32 %v1162, 0.0
        %v1179 = vmax.f32 %v1163, 0.0
        %v1180 = vmax.f32 %v1164, 0.0
        %v1181 = vmax.f32 %v1165, 0.0
        %v1182 = vmax.f32 %v1166, 0.0
        %v1183 = vmax.f32 %v1167, 0.0
        %v1184 = vmax.f32 %v1168, 0.0
        %v1185 = vmax.f32 %v1169, 0.0
        %v1186 = vmax.f32 %v1170, 0.0
        %v1187 = vmax.f32 %v1171, 0.0
        %v1188 = vmax.f32 %v1172, 0.0
        %v1189 = vmax.f32 %v1173, 0.0
        %v1190 = vmax.f32 %v1174, 0.0
        %v1191 = vmax.f32 %v1175, 0.0
        %v1192 = vmax.f32 %v1176, 0.0
        %v1193 = vmax.f32 %v1177, 0.0
        %v1194 = vld [vmem:[%s367] sm:$0xff]
        %v1195 = vld [vmem:[%s367 + $0x8] sm:$0xff]
        %v1196 = vld [vmem:[%s367 + $0x10] sm:$0xff]
        %v1197 = vld [vmem:[%s367 + $0x18] sm:$0xff]
        %v1198 = vld [vmem:[%s367 + $0x20] sm:$0xff]
        %v1199 = vld [vmem:[%s367 + $0x28] sm:$0xff]
        %v1200 = vld [vmem:[%s367 + $0x30] sm:$0xff]
        %v1201 = vld [vmem:[%s367 + $0x38] sm:$0xff]
        %v1202 = vld [vmem:[%s367 + $0x40] sm:$0xff]
        %v1203 = vld [vmem:[%s367 + $0x48] sm:$0xff]
        %v1204 = vld [vmem:[%s367 + $0x50] sm:$0xff]
        %v1205 = vld [vmem:[%s367 + $0x58] sm:$0xff]
        %v1206 = vld [vmem:[%s367 + $0x60] sm:$0xff]
        %v1207 = vld [vmem:[%s367 + $0x68] sm:$0xff]
        %v1208 = vld [vmem:[%s367 + $0x70] sm:$0xff]
        %v1209 = vld [vmem:[%s367 + $0x78] sm:$0xff]
        %v1210 = vld [vmem:[%s449] sm:$0x1]
        %v1212 = vlaneseq
        %v1213 = vshrl.u32 %v1212, 7
        %v1214 = vsub.s32 0, %v1213
        %v1215 = vrot.slane %v1210, %v1214
        %1217 = vmatprep.subr.mxu0 0.0
        %1218 = vmatpush1.msra.mxu0 %v1194
        %1219 = vmatprep.subr.mxu0 0.0
        %1220 = vmatpush1.msra.mxu0 %v1195
        %1221 = vmatprep.subr.mxu0 0.0
        %1222 = vmatpush1.msra.mxu0 %v1196
        %1223 = vmatprep.subr.mxu0 0.0
        %1224 = vmatpush1.msra.mxu0 %v1197
        %1225 = vmatprep.subr.mxu0 0.0
        %1226 = vmatpush1.msra.mxu0 %v1198
        %1227 = vmatprep.subr.mxu0 0.0
        %1228 = vmatpush1.msra.mxu0 %v1199
        %1229 = vmatprep.subr.mxu0 0.0
        %1230 = vmatpush1.msra.mxu0 %v1200
        %1231 = vmatprep.subr.mxu0 0.0
        %1232 = vmatpush1.msra.mxu0 %v1201
        %1233 = vmatprep.subr.mxu0 0.0
        %1234 = vmatpush1.msra.mxu0 %v1202
        %1235 = vmatprep.subr.mxu0 0.0
        %1236 = vmatpush1.msra.mxu0 %v1203
        %1237 = vmatprep.subr.mxu0 0.0
        %1238 = vmatpush1.msra.mxu0 %v1204
        %1239 = vmatprep.subr.mxu0 0.0
        %1240 = vmatpush1.msra.mxu0 %v1205
        %1241 = vmatprep.subr.mxu0 0.0
        %1242 = vmatpush1.msra.mxu0 %v1206
        %1243 = vmatprep.subr.mxu0 0.0
        %1244 = vmatpush1.msra.mxu0 %v1207
        %1245 = vmatprep.subr.mxu0 0.0
        %1246 = vmatpush1.msra.mxu0 %v1208
        %1247 = vmatprep.subr.mxu0 0.0
        %1248 = vmatpush1.msra.mxu0 %v1209
        %1249 = vmatprep.subr.mxu0 0.0
        %1250 = vmatpush1.msra.mxu0 0.0
        %1251 = vmatprep.subr.mxu0 0.0
        %1252 = vmatpush1.msra.mxu0 0.0
        %1253 = vmatprep.subr.mxu0 0.0
        %1254 = vmatpush1.msra.mxu0 0.0
        %1255 = vmatprep.subr.mxu0 0.0
        %1256 = vmatpush1.msra.mxu0 0.0
        %1257 = vmatprep.subr.mxu0 0.0
        %1258 = vmatpush1.msra.mxu0 0.0
        %1259 = vmatprep.subr.mxu0 0.0
        %1260 = vmatpush1.msra.mxu0 0.0
        %1261 = vmatprep.subr.mxu0 0.0
        %1262 = vmatpush1.msra.mxu0 0.0
        %1263 = vmatprep.subr.mxu0 0.0
        %1264 = vmatpush1.msra.mxu0 0.0
        %1265 = vmatprep.subr.mxu0 0.0
        %1266 = vmatpush1.msra.mxu0 0.0
        %1267 = vmatprep.subr.mxu0 0.0
        %1268 = vmatpush1.msra.mxu0 0.0
        %1269 = vmatprep.subr.mxu0 0.0
        %1270 = vmatpush1.msra.mxu0 0.0
        %1271 = vmatprep.subr.mxu0 0.0
        %1272 = vmatpush1.msra.mxu0 0.0
        %1273 = vmatprep.subr.mxu0 0.0
        %1274 = vmatpush1.msra.mxu0 0.0
        %1275 = vmatprep.subr.mxu0 0.0
        %1276 = vmatpush1.msra.mxu0 0.0
        %1277 = vmatprep.subr.mxu0 0.0
        %1278 = vmatpush1.msra.mxu0 0.0
        %1279 = vmatprep.subr.mxu0 0.0
        %1280 = vmatpush1.msra.mxu0 0.0
        %1281 = vmatprep.mubr.f32.mxu0 0.0
        %1282 = vmatmul.mubr.f32.gmra.mrb[0].mxu0 %v1178
        %v1283 = vpop.f32.mrb[0].mxu0
        %v1284 = vadd.f32 %v1215, %v1283
        %v1285 = vpop.f32.mrb[0].mxu0
        %1286 = vmatprep.mubr.f32.mxu0 0.0
        %1287 = vmatmul.mubr.f32.gmra.mrb[0].mxu0 %v1179
        %v1288 = vpop.f32.mrb[0].mxu0
        %v1289 = vadd.f32 %v1215, %v1288
        %v1290 = vpop.f32.mrb[0].mxu0
        %1291 = vmatprep.mubr.f32.mxu0 0.0
        %1292 = vmatmul.mubr.f32.gmra.mrb[0].mxu0 %v1180
        %v1293 = vpop.f32.mrb[0].mxu0
        %v1294 = vadd.f32 %v1215, %v1293
        %v1295 = vpop.f32.mrb[0].mxu0
        %1296 = vmatprep.mubr.f32.mxu0 0.0
        %1297 = vmatmul.mubr.f32.gmra.mrb[0].mxu0 %v1181
        %v1298 = vpop.f32.mrb[0].mxu0
        %v1299 = vadd.f32 %v1215, %v1298
        %v1300 = vpop.f32.mrb[0].mxu0
        %1301 = vmatprep.mubr.f32.mxu0 0.0
        %1302 = vmatmul.mubr.f32.gmra.mrb[0].mxu0 %v1182
        %v1303 = vpop.f32.mrb[0].mxu0
        %v1304 = vadd.f32 %v1215, %v1303
        %v1305 = vpop.f32.mrb[0].mxu0
        %1306 = vmatprep.mubr.f32.mxu0 0.0
        %1307 = vmatmul.mubr.f32.gmra.mrb[0].mxu0 %v1183
        %v1308 = vpop.f32.mrb[0].mxu0
        %v1309 = vadd.f32 %v1215, %v1308
        %v1310 = vpop.f32.mrb[0].mxu0
        %1311 = vmatprep.mubr.f32.mxu0 0.0
        %1312 = vmatmul.mubr.f32.gmra.mrb[0].mxu0 %v1184
        %v1313 = vpop.f32.mrb[0].mxu0
        %v1314 = vadd.f32 %v1215, %v1313
        %v1315 = vpop.f32.mrb[0].mxu0
        %1316 = vmatprep.mubr.f32.mxu0 0.0
        %1317 = vmatmul.mubr.f32.gmra.mrb[0].mxu0 %v1185
        %v1318 = vpop.f32.mrb[0].mxu0
        %v1319 = vadd.f32 %v1215, %v1318
        %v1320 = vpop.f32.mrb[0].mxu0
        %1321 = vmatprep.mubr.f32.mxu0 0.0
        %1322 = vmatmul.mubr.f32.gmra.mrb[0].mxu0 %v1186
        %v1323 = vpop.f32.mrb[0].mxu0
        %v1324 = vadd.f32 %v1215, %v1323
        %v1325 = vpop.f32.mrb[0].mxu0
        %1326 = vmatprep.mubr.f32.mxu0 0.0
        %1327 = vmatmul.mubr.f32.gmra.mrb[0].mxu0 %v1187
        %v1328 = vpop.f32.mrb[0].mxu0
        %v1329 = vadd.f32 %v1215, %v1328
        %v1330 = vpop.f32.mrb[0].mxu0
        %1331 = vmatprep.mubr.f32.mxu0 0.0
        %1332 = vmatmul.mubr.f32.gmra.mrb[0].mxu0 %v1188
        %v1333 = vpop.f32.mrb[0].mxu0
        %v1334 = vadd.f32 %v1215, %v1333
        %v1335 = vpop.f32.mrb[0].mxu0
        %1336 = vmatprep.mubr.f32.mxu0 0.0
        %1337 = vmatmul.mubr.f32.gmra.mrb[0].mxu0 %v1189
        %v1338 = vpop.f32.mrb[0].mxu0
        %v1339 = vadd.f32 %v1215, %v1338
        %v1340 = vpop.f32.mrb[0].mxu0
        %1341 = vmatprep.mubr.f32.mxu0 0.0
        %1342 = vmatmul.mubr.f32.gmra.mrb[0].mxu0 %v1190
        %v1343 = vpop.f32.mrb[0].mxu0
        %v1344 = vadd.f32 %v1215, %v1343
        %v1345 = vpop.f32.mrb[0].mxu0
        %1346 = vmatprep.mubr.f32.mxu0 0.0
        %1347 = vmatmul.mubr.f32.gmra.mrb[0].mxu0 %v1191
        %v1348 = vpop.f32.mrb[0].mxu0
        %v1349 = vadd.f32 %v1215, %v1348
        %v1350 = vpop.f32.mrb[0].mxu0
        %1351 = vmatprep.mubr.f32.mxu0 0.0
        %1352 = vmatmul.mubr.f32.gmra.mrb[0].mxu0 %v1192
        %v1353 = vpop.f32.mrb[0].mxu0
        %v1354 = vadd.f32 %v1215, %v1353
        %v1355 = vpop.f32.mrb[0].mxu0
        %1356 = vmatprep.mubr.f32.mxu0 0.0
        %1357 = vmatmul.mubr.f32.gmra.mrb[0].mxu0 %v1193
        %v1358 = vpop.f32.mrb[0].mxu0
        %v1359 = vadd.f32 %v1215, %v1358
        %v1360 = vpop.f32.mrb[0].mxu0
        %1361 = vdwg.mxu0
        %v1362 = vlaneseq
        %v1363 = vshrl.u32 %v1362, 7
        %v1364 = vadd.s32 %v1363, 8
        %v1365 = vadd.s32 %v1363, 16
        %v1366 = vadd.s32 %v1363, 24
        %v1367 = vadd.s32 %v1363, 32
        %v1368 = vadd.s32 %v1363, 40
        %v1369 = vadd.s32 %v1363, 48
        %v1370 = vadd.s32 %v1363, 56
        %v1371 = vadd.s32 %v1363, 64
        %v1372 = vadd.s32 %v1363, 72
        %v1373 = vadd.s32 %v1363, 80
        %v1374 = vadd.s32 %v1363, 88
        %v1375 = vadd.s32 %v1363, 96
        %v1376 = vadd.s32 %v1363, 104
        %v1377 = vadd.s32 %v1363, 112
        %v1378 = vadd.s32 %v1363, 120
        %v1379 = vstv %s561
        %v1380 = vadd.s32 %v1363, %v1379
        %v1381 = vadd.s32 %v1364, %v1379
        %v1382 = vadd.s32 %v1365, %v1379
        %v1383 = vadd.s32 %v1366, %v1379
        %v1384 = vadd.s32 %v1367, %v1379
        %v1385 = vadd.s32 %v1368, %v1379
        %v1386 = vadd.s32 %v1369, %v1379
        %v1387 = vadd.s32 %v1370, %v1379
        %v1388 = vadd.s32 %v1371, %v1379
        %v1389 = vadd.s32 %v1372, %v1379
        %v1390 = vadd.s32 %v1373, %v1379
        %v1391 = vadd.s32 %v1374, %v1379
        %v1392 = vadd.s32 %v1375, %v1379
        %v1393 = vadd.s32 %v1376, %v1379
        %v1394 = vadd.s32 %v1377, %v1379
        %v1395 = vadd.s32 %v1378, %v1379
        %vm1396 = vcmp.lt.s32.totalorder %v1380, 8
        %vm1397 = vcmp.lt.s32.totalorder %v1381, 8
        %vm1398 = vcmp.lt.s32.totalorder %v1382, 8
        %vm1399 = vcmp.lt.s32.totalorder %v1383, 8
        %vm1400 = vcmp.lt.s32.totalorder %v1384, 8
        %vm1401 = vcmp.lt.s32.totalorder %v1385, 8
        %vm1402 = vcmp.lt.s32.totalorder %v1386, 8
        %vm1403 = vcmp.lt.s32.totalorder %v1387, 8
        %vm1404 = vcmp.lt.s32.totalorder %v1388, 8
        %vm1405 = vcmp.lt.s32.totalorder %v1389, 8
        %vm1406 = vcmp.lt.s32.totalorder %v1390, 8
        %vm1407 = vcmp.lt.s32.totalorder %v1391, 8
        %vm1408 = vcmp.lt.s32.totalorder %v1392, 8
        %vm1409 = vcmp.lt.s32.totalorder %v1393, 8
        %vm1410 = vcmp.lt.s32.totalorder %v1394, 8
        %vm1411 = vcmp.lt.s32.totalorder %v1395, 8
        %v1412 = vsel %vm1396, 0.125, 0.0
        %v1413 = vsel %vm1397, 0.125, 0.0
        %v1414 = vsel %vm1398, 0.125, 0.0
        %v1415 = vsel %vm1399, 0.125, 0.0
        %v1416 = vsel %vm1400, 0.125, 0.0
        %v1417 = vsel %vm1401, 0.125, 0.0
        %v1418 = vsel %vm1402, 0.125, 0.0
        %v1419 = vsel %vm1403, 0.125, 0.0
        %v1420 = vsel %vm1404, 0.125, 0.0
        %v1421 = vsel %vm1405, 0.125, 0.0
        %v1422 = vsel %vm1406, 0.125, 0.0
        %v1423 = vsel %vm1407, 0.125, 0.0
        %v1424 = vsel %vm1408, 0.125, 0.0
        %v1425 = vsel %vm1409, 0.125, 0.0
        %v1426 = vsel %vm1410, 0.125, 0.0
        %v1427 = vsel %vm1411, 0.125, 0.0
        %v1428 = vmul.f32 %v1284, %v1412
        %v1429 = vmul.f32 %v1289, %v1413
        %v1430 = vmul.f32 %v1294, %v1414
        %v1431 = vmul.f32 %v1299, %v1415
        %v1432 = vmul.f32 %v1304, %v1416
        %v1433 = vmul.f32 %v1309, %v1417
        %v1434 = vmul.f32 %v1314, %v1418
        %v1435 = vmul.f32 %v1319, %v1419
        %v1436 = vmul.f32 %v1324, %v1420
        %v1437 = vmul.f32 %v1329, %v1421
        %v1438 = vmul.f32 %v1334, %v1422
        %v1439 = vmul.f32 %v1339, %v1423
        %v1440 = vmul.f32 %v1344, %v1424
        %v1441 = vmul.f32 %v1349, %v1425
        %v1442 = vmul.f32 %v1354, %v1426
        %v1443 = vmul.f32 %v1359, %v1427
        %v1444 = vadd.f32 %v1428, %v1429
        %v1445 = vadd.f32 %v1444, %v1430
        %v1446 = vadd.f32 %v1445, %v1431
        %v1447 = vadd.f32 %v1446, %v1432
        %v1448 = vadd.f32 %v1447, %v1433
        %v1449 = vadd.f32 %v1448, %v1434
        %v1450 = vadd.f32 %v1449, %v1435
        %v1451 = vadd.f32 %v1450, %v1436
        %v1452 = vadd.f32 %v1451, %v1437
        %v1453 = vadd.f32 %v1452, %v1438
        %v1454 = vadd.f32 %v1453, %v1439
        %v1455 = vadd.f32 %v1454, %v1440
        %v1456 = vadd.f32 %v1455, %v1441
        %v1457 = vadd.f32 %v1456, %v1442
        %v1458 = vadd.f32 %v1457, %v1443
        %v1459 = vrot.slane %v1458, 4
        %v1460 = vadd.f32 %v1458, %v1459
        %v1461 = vrot.slane %v1460, 2
        %v1462 = vadd.f32 %v1460, %v1461
        %v1463 = vrot.slane %v1462, 1
        %v1464 = vadd.f32 %v1462, %v1463
        %v1465 = vmul.f32 %v1284, %v1284
        %v1466 = vmul.f32 %v1289, %v1289
        %v1467 = vmul.f32 %v1294, %v1294
        %v1468 = vmul.f32 %v1299, %v1299
        %v1469 = vmul.f32 %v1304, %v1304
        %v1470 = vmul.f32 %v1309, %v1309
        %v1471 = vmul.f32 %v1314, %v1314
        %v1472 = vmul.f32 %v1319, %v1319
        %v1473 = vmul.f32 %v1324, %v1324
        %v1474 = vmul.f32 %v1329, %v1329
        %v1475 = vmul.f32 %v1334, %v1334
        %v1476 = vmul.f32 %v1339, %v1339
        %v1477 = vmul.f32 %v1344, %v1344
        %v1478 = vmul.f32 %v1349, %v1349
        %v1479 = vmul.f32 %v1354, %v1354
        %v1480 = vmul.f32 %v1359, %v1359
        %v1481 = vmul.f32 %v1465, %v1412
        %v1482 = vmul.f32 %v1466, %v1413
        %v1483 = vmul.f32 %v1467, %v1414
        %v1484 = vmul.f32 %v1468, %v1415
        %v1485 = vmul.f32 %v1469, %v1416
        %v1486 = vmul.f32 %v1470, %v1417
        %v1487 = vmul.f32 %v1471, %v1418
        %v1488 = vmul.f32 %v1472, %v1419
        %v1489 = vmul.f32 %v1473, %v1420
        %v1490 = vmul.f32 %v1474, %v1421
        %v1491 = vmul.f32 %v1475, %v1422
        %v1492 = vmul.f32 %v1476, %v1423
        %v1493 = vmul.f32 %v1477, %v1424
        %v1494 = vmul.f32 %v1478, %v1425
        %v1495 = vmul.f32 %v1479, %v1426
        %v1496 = vmul.f32 %v1480, %v1427
        %v1497 = vadd.f32 %v1481, %v1482
        %v1498 = vadd.f32 %v1497, %v1483
        %v1499 = vadd.f32 %v1498, %v1484
        %v1500 = vadd.f32 %v1499, %v1485
        %v1501 = vadd.f32 %v1500, %v1486
        %v1502 = vadd.f32 %v1501, %v1487
        %v1503 = vadd.f32 %v1502, %v1488
        %v1504 = vadd.f32 %v1503, %v1489
        %v1505 = vadd.f32 %v1504, %v1490
        %v1506 = vadd.f32 %v1505, %v1491
        %v1507 = vadd.f32 %v1506, %v1492
        %v1508 = vadd.f32 %v1507, %v1493
        %v1509 = vadd.f32 %v1508, %v1494
        %v1510 = vadd.f32 %v1509, %v1495
        %v1511 = vadd.f32 %v1510, %v1496
        %v1512 = vrot.slane %v1511, 4
        %v1513 = vadd.f32 %v1511, %v1512
        %v1514 = vrot.slane %v1513, 2
        %v1515 = vadd.f32 %v1513, %v1514
        %v1516 = vrot.slane %v1515, 1
        %v1517 = vadd.f32 %v1515, %v1516
        %v1518 = vld [vmem:[#allocation7] sm:$0x3]
        %vm1519 = vcmask 1040384
        %v1520 = vsel %vm1519, %v1464, %v1517
        %v1521 = vadd.f32 %v1518, %v1520
        %1522 = vst [vmem:[#allocation7] sm:$0x3] %v1521
        %s1523 = scalar_lea.vmem [#allocation5], %s561
        %1524 = vst [vmem:[%s1523] sm:$0xff] %v1284
        %1525 = vst [vmem:[%s1523 + $0x8] sm:$0xff] %v1289
        %1526 = vst [vmem:[%s1523 + $0x10] sm:$0xff] %v1294
        %1527 = vst [vmem:[%s1523 + $0x18] sm:$0xff] %v1299
        %1528 = vst [vmem:[%s1523 + $0x20] sm:$0xff] %v1304
        %1529 = vst [vmem:[%s1523 + $0x28] sm:$0xff] %v1309
        %1530 = vst [vmem:[%s1523 + $0x30] sm:$0xff] %v1314
        %1531 = vst [vmem:[%s1523 + $0x38] sm:$0xff] %v1319
        %1532 = vst [vmem:[%s1523 + $0x40] sm:$0xff] %v1324
        %1533 = vst [vmem:[%s1523 + $0x48] sm:$0xff] %v1329
        %1534 = vst [vmem:[%s1523 + $0x50] sm:$0xff] %v1334
        %1535 = vst [vmem:[%s1523 + $0x58] sm:$0xff] %v1339
        %1536 = vst [vmem:[%s1523 + $0x60] sm:$0xff] %v1344
        %1537 = vst [vmem:[%s1523 + $0x68] sm:$0xff] %v1349
        %1538 = vst [vmem:[%s1523 + $0x70] sm:$0xff] %v1354
        %1539 = vst [vmem:[%s1523 + $0x78] sm:$0xff] %v1359
        // Predicated region
        $region111: #{tpu_custom_call.1} parent=51 // pred_check
          %p1540 = pneg %p555
        $region112: #{tpu_custom_call.1} parent=51 // pred_check_branch
          %1542 = sbr.rel (%p1540) target = $region114
        $region113: #{tpu_custom_call.1} parent=51 // pred_region
          %v1543 = vld [vmem:[#allocation6] sm:$0xff]
          %v1544 = vld [vmem:[%s438] sm:$0xff]
          %1545 = vmatprep.subr.mxu0 0.0
          %1546 = vmatpush1.msra.mxu0 %v1284
          %1547 = vmatprep.subr.mxu0 0.0
          %1548 = vmatpush1.msra.mxu0 %v1289
          %1549 = vmatprep.subr.mxu0 0.0
          %1550 = vmatpush1.msra.mxu0 %v1294
          %1551 = vmatprep.subr.mxu0 0.0
          %1552 = vmatpush1.msra.mxu0 %v1299
          %1553 = vmatprep.subr.mxu0 0.0
          %1554 = vmatpush1.msra.mxu0 %v1304
          %1555 = vmatprep.subr.mxu0 0.0
          %1556 = vmatpush1.msra.mxu0 %v1309
          %1557 = vmatprep.subr.mxu0 0.0
          %1558 = vmatpush1.msra.mxu0 %v1314
          %1559 = vmatprep.subr.mxu0 0.0
          %1560 = vmatpush1.msra.mxu0 %v1319
          %1561 = vmatprep.subr.mxu0 0.0
          %1562 = vmatpush1.msra.mxu0 %v1324
          %1563 = vmatprep.subr.mxu0 0.0
          %1564 = vmatpush1.msra.mxu0 %v1329
          %1565 = vmatprep.subr.mxu0 0.0
          %1566 = vmatpush1.msra.mxu0 %v1334
          %1567 = vmatprep.subr.mxu0 0.0
          %1568 = vmatpush1.msra.mxu0 %v1339
          %1569 = vmatprep.subr.mxu0 0.0
          %1570 = vmatpush1.msra.mxu0 %v1344
          %1571 = vmatprep.subr.mxu0 0.0
          %1572 = vmatpush1.msra.mxu0 %v1349
          %1573 = vmatprep.subr.mxu0 0.0
          %1574 = vmatpush1.msra.mxu0 %v1354
          %1575 = vmatprep.subr.mxu0 0.0
          %1576 = vmatpush1.msra.mxu0 %v1359
          %1577 = vmatprep.subr.mxu0 0.0
          %1578 = vmatpush1.msra.mxu0 0.0
          %1579 = vmatprep.subr.mxu0 0.0
          %1580 = vmatpush1.msra.mxu0 0.0
          %1581 = vmatprep.subr.mxu0 0.0
          %1582 = vmatpush1.msra.mxu0 0.0
          %1583 = vmatprep.subr.mxu0 0.0
          %1584 = vmatpush1.msra.mxu0 0.0
          %1585 = vmatprep.subr.mxu0 0.0
          %1586 = vmatpush1.msra.mxu0 0.0
          %1587 = vmatprep.subr.mxu0 0.0
          %1588 = vmatpush1.msra.mxu0 0.0
          %1589 = vmatprep.subr.mxu0 0.0
          %1590 = vmatpush1.msra.mxu0 0.0
          %1591 = vmatprep.subr.mxu0 0.0
          %1592 = vmatpush1.msra.mxu0 0.0
          %1593 = vmatprep.subr.mxu0 0.0
          %1594 = vmatpush1.msra.mxu0 0.0
          %1595 = vmatprep.subr.mxu0 0.0
          %1596 = vmatpush1.msra.mxu0 0.0
          %1597 = vmatprep.subr.mxu0 0.0
          %1598 = vmatpush1.msra.mxu0 0.0
          %1599 = vmatprep.subr.mxu0 0.0
          %1600 = vmatpush1.msra.mxu0 0.0
          %1601 = vmatprep.subr.mxu0 0.0
          %1602 = vmatpush1.msra.mxu0 0.0
          %1603 = vmatprep.subr.mxu0 0.0
          %1604 = vmatpush1.msra.mxu0 0.0
          %1605 = vmatprep.subr.mxu0 0.0
          %1606 = vmatpush1.msra.mxu0 0.0
          %1607 = vmatprep.subr.mxu0 0.0
          %1608 = vmatpush1.msra.mxu0 0.0
          %1609 = vmatprep.mubr.f32.mxu0 0.0
          %1610 = vmatmul.mubr.f32.gmra.mrb[0].mxu0 %v1544
          %v1611 = vpop.f32.mrb[0].mxu0
          %v1612 = vadd.f32 0.0, %v1611
          %v1613 = vpop.f32.mrb[0].mxu0
          %1614 = vdwg.mxu0
          %v1615 = vadd.f32 %v1543, %v1612
          %1616 = vst [vmem:[#allocation6] sm:$0xff] %v1615
        $region114: #{tpu_custom_call.1} parent=51 // pred_fallthru
          _
        // Predicated region
        $region115: #{tpu_custom_call.1} parent=51 // pred_check
          %p1617 = pneg %p458
        $region116: #{tpu_custom_call.1} parent=51 // pred_check_branch
          %1619 = sbr.rel (%p1617) target = $region118
        $region117: #{tpu_custom_call.1} parent=51 // pred_region
          %v1620 = vld [vmem:[#allocation7] sm:$0x3]
          %v1621 = vmul.f32 %v1620, %v1620
          %v1623 = vrot.slane %v1621, 7
          %v1625 = vsub.f32 %v1620, %v1623
          %v1626 = vmax.f32 %v1625, 0.0
          %v1627 = vadd.f32 %v1626, 1e-05
          %v1628 = vrsqrt.pop %v1627
          %v1629 = vld [vmem:[%s452] sm:$0x1]
          %v1631 = vlaneseq
          %v1632 = vshrl.u32 %v1631, 7
          %v1633 = vsub.s32 0, %v1632
          %v1634 = vrot.slane %v1629, %v1633
          %v1636 = vmul.f32 %v1628, %v1634
          %v1637 = vld [vmem:[%s455] sm:$0x1]
          %v1639 = vrot.slane %v1636, 1
          %v1641 = vmul.f32 %v1620, %v1639
          %v1642 = vsub.f32 %v1637, %v1641
          %p1643 = scmp.ne.s32.totalorder %s30, 1
          // Predicated region
          $region119: #{tpu_custom_call.1} parent=117 // pred_check
            %p1644 = pneg %p1643
          $region120: #{tpu_custom_call.1} parent=117 // pred_check_branch
            %1646 = sbr.rel (%p1644) target = $region122
          $region121: #{tpu_custom_call.1} parent=117 // pred_region
            %v1647 = vld [vmem:[#allocation5] sm:$0xff]
            %v1648 = vld [vmem:[#allocation5 + $0x8] sm:$0xff]
            %v1649 = vld [vmem:[#allocation5 + $0x10] sm:$0xff]
            %v1650 = vld [vmem:[#allocation5 + $0x18] sm:$0xff]
            %v1651 = vld [vmem:[#allocation5 + $0x20] sm:$0xff]
            %v1652 = vld [vmem:[#allocation5 + $0x28] sm:$0xff]
            %v1653 = vld [vmem:[#allocation5 + $0x30] sm:$0xff]
            %v1654 = vld [vmem:[#allocation5 + $0x38] sm:$0xff]
            %v1655 = vld [vmem:[#allocation5 + $0x40] sm:$0xff]
            %v1656 = vld [vmem:[#allocation5 + $0x48] sm:$0xff]
            %v1657 = vld [vmem:[#allocation5 + $0x50] sm:$0xff]
            %v1658 = vld [vmem:[#allocation5 + $0x58] sm:$0xff]
            %v1659 = vld [vmem:[#allocation5 + $0x60] sm:$0xff]
            %v1660 = vld [vmem:[#allocation5 + $0x68] sm:$0xff]
            %v1661 = vld [vmem:[#allocation5 + $0x70] sm:$0xff]
            %v1662 = vld [vmem:[#allocation5 + $0x78] sm:$0xff]
            %v1663 = vlaneseq
            %v1664 = vshrl.u32 %v1663, 7
            %v1665 = vsub.s32 1, %v1664
            %v1666 = vrot.slane %v1636, %v1665
            %v1667 = vmul.f32 %v1647, %v1666
            %v1668 = vmul.f32 %v1648, %v1666
            %v1669 = vmul.f32 %v1649, %v1666
            %v1670 = vmul.f32 %v1650, %v1666
            %v1671 = vmul.f32 %v1651, %v1666
            %v1672 = vmul.f32 %v1652, %v1666
            %v1673 = vmul.f32 %v1653, %v1666
            %v1674 = vmul.f32 %v1654, %v1666
            %v1675 = vmul.f32 %v1655, %v1666
            %v1676 = vmul.f32 %v1656, %v1666
            %v1677 = vmul.f32 %v1657, %v1666
            %v1678 = vmul.f32 %v1658, %v1666
            %v1679 = vmul.f32 %v1659, %v1666
            %v1680 = vmul.f32 %v1660, %v1666
            %v1681 = vmul.f32 %v1661, %v1666
            %v1682 = vmul.f32 %v1662, %v1666
            %v1684 = vlaneseq
            %v1685 = vshrl.u32 %v1684, 7
            %v1686 = vsub.s32 0, %v1685
            %v1687 = vrot.slane %v1642, %v1686
            %v1689 = vadd.f32 %v1667, %v1687
            %v1690 = vadd.f32 %v1668, %v1687
            %v1691 = vadd.f32 %v1669, %v1687
            %v1692 = vadd.f32 %v1670, %v1687
            %v1693 = vadd.f32 %v1671, %v1687
            %v1694 = vadd.f32 %v1672, %v1687
            %v1695 = vadd.f32 %v1673, %v1687
            %v1696 = vadd.f32 %v1674, %v1687
            %v1697 = vadd.f32 %v1675, %v1687
            %v1698 = vadd.f32 %v1676, %v1687
            %v1699 = vadd.f32 %v1677, %v1687
            %v1700 = vadd.f32 %v1678, %v1687
            %v1701 = vadd.f32 %v1679, %v1687
            %v1702 = vadd.f32 %v1680, %v1687
            %v1703 = vadd.f32 %v1681, %v1687
            %v1704 = vadd.f32 %v1682, %v1687
            %v1705 = vmax.f32 %v1689, 0.0
            %v1706 = vmax.f32 %v1690, 0.0
            %v1707 = vmax.f32 %v1691, 0.0
            %v1708 = vmax.f32 %v1692, 0.0
            %v1709 = vmax.f32 %v1693, 0.0
            %v1710 = vmax.f32 %v1694, 0.0
            %v1711 = vmax.f32 %v1695, 0.0
            %v1712 = vmax.f32 %v1696, 0.0
            %v1713 = vmax.f32 %v1697, 0.0
            %v1714 = vmax.f32 %v1698, 0.0
            %v1715 = vmax.f32 %v1699, 0.0
            %v1716 = vmax.f32 %v1700, 0.0
            %v1717 = vmax.f32 %v1701, 0.0
            %v1718 = vmax.f32 %v1702, 0.0
            %v1719 = vmax.f32 %v1703, 0.0
            %v1720 = vmax.f32 %v1704, 0.0
            %v1721 = vpack.c.bf16 %v1706, %v1705
            %v1722 = vpack.c.bf16 %v1708, %v1707
            %v1723 = vpack.c.bf16 %v1710, %v1709
            %v1724 = vpack.c.bf16 %v1712, %v1711
            %v1725 = vpack.c.bf16 %v1714, %v1713
            %v1726 = vpack.c.bf16 %v1716, %v1715
            %v1727 = vpack.c.bf16 %v1718, %v1717
            %v1728 = vpack.c.bf16 %v1720, %v1719
            %v1729 = vunpack.c.l.bf16 %v1721
            %v1730 = vunpack.c.h.bf16 %v1721
            %v1731 = vunpack.c.l.bf16 %v1722
            %v1732 = vunpack.c.h.bf16 %v1722
            %v1733 = vunpack.c.l.bf16 %v1723
            %v1734 = vunpack.c.h.bf16 %v1723
            %v1735 = vunpack.c.l.bf16 %v1724
            %v1736 = vunpack.c.h.bf16 %v1724
            %v1737 = vunpack.c.l.bf16 %v1725
            %v1738 = vunpack.c.h.bf16 %v1725
            %v1739 = vunpack.c.l.bf16 %v1726
            %v1740 = vunpack.c.h.bf16 %v1726
            %v1741 = vunpack.c.l.bf16 %v1727
            %v1742 = vunpack.c.h.bf16 %v1727
            %v1743 = vunpack.c.l.bf16 %v1728
            %v1744 = vunpack.c.h.bf16 %v1728
            %v1745 = vsub.f32 %v1705, %v1729
            %v1746 = vsub.f32 %v1706, %v1730
            %v1747 = vsub.f32 %v1707, %v1731
            %v1748 = vsub.f32 %v1708, %v1732
            %v1749 = vsub.f32 %v1709, %v1733
            %v1750 = vsub.f32 %v1710, %v1734
            %v1751 = vsub.f32 %v1711, %v1735
            %v1752 = vsub.f32 %v1712, %v1736
            %v1753 = vsub.f32 %v1713, %v1737
            %v1754 = vsub.f32 %v1714, %v1738
            %v1755 = vsub.f32 %v1715, %v1739
            %v1756 = vsub.f32 %v1716, %v1740
            %v1757 = vsub.f32 %v1717, %v1741
            %v1758 = vsub.f32 %v1718, %v1742
            %v1759 = vsub.f32 %v1719, %v1743
            %v1760 = vsub.f32 %v1720, %v1744
            %v1761 = vpack.c.bf16 %v1746, %v1745
            %v1762 = vpack.c.bf16 %v1748, %v1747
            %v1763 = vpack.c.bf16 %v1750, %v1749
            %v1764 = vpack.c.bf16 %v1752, %v1751
            %v1765 = vpack.c.bf16 %v1754, %v1753
            %v1766 = vpack.c.bf16 %v1756, %v1755
            %v1767 = vpack.c.bf16 %v1758, %v1757
            %v1768 = vpack.c.bf16 %v1760, %v1759
            %1769 = vst [vmem:[#allocation3] sm:$0xff] %v1721
            %1770 = vst [vmem:[#allocation3 + $0x8] sm:$0xff] %v1722
            %1771 = vst [vmem:[#allocation3 + $0x10] sm:$0xff] %v1723
            %1772 = vst [vmem:[#allocation3 + $0x18] sm:$0xff] %v1724
            %1773 = vst [vmem:[#allocation3 + $0x20] sm:$0xff] %v1725
            %1774 = vst [vmem:[#allocation3 + $0x28] sm:$0xff] %v1726
            %1775 = vst [vmem:[#allocation3 + $0x30] sm:$0xff] %v1727
            %1776 = vst [vmem:[#allocation3 + $0x38] sm:$0xff] %v1728
            %1777 = vst [vmem:[#allocation4] sm:$0xff] %v1761
            %1778 = vst [vmem:[#allocation4 + $0x8] sm:$0xff] %v1762
            %1779 = vst [vmem:[#allocation4 + $0x10] sm:$0xff] %v1763
            %1780 = vst [vmem:[#allocation4 + $0x18] sm:$0xff] %v1764
            %1781 = vst [vmem:[#allocation4 + $0x20] sm:$0xff] %v1765
            %1782 = vst [vmem:[#allocation4 + $0x28] sm:$0xff] %v1766
            %1783 = vst [vmem:[#allocation4 + $0x30] sm:$0xff] %v1767
            %1784 = vst [vmem:[#allocation4 + $0x38] sm:$0xff] %v1768
          $region122: #{tpu_custom_call.1} parent=117 // pred_fallthru
            _
          // Predicated region
          $region123: #{tpu_custom_call.1} parent=117 // pred_check
            %p1785 = pneg %p555
          $region124: #{tpu_custom_call.1} parent=117 // pred_check_branch
            %1787 = sbr.rel (%p1785) target = $region126
          $region125: #{tpu_custom_call.1} parent=117 // pred_region
            %v1788 = vld [vmem:[#allocation6] sm:$0xff]
            %v1789 = vlaneseq
            %v1790 = vshrl.u32 %v1789, 7
            %v1791 = vsub.s32 1, %v1790
            %v1792 = vrot.slane %v1636, %v1791
            %v1793 = vmul.f32 %v1788, %v1792
            %v1795 = vlaneseq
            %v1796 = vshrl.u32 %v1795, 7
            %v1797 = vsub.s32 0, %v1796
            %v1798 = vrot.slane %v1642, %v1797
            %v1800 = vadd.f32 %v1793, %v1798
            %1801 = vst [vmem:[#allocation12] sm:$0xff] %v1800
          $region126: #{tpu_custom_call.1} parent=117 // pred_fallthru
            _
        $region118: #{tpu_custom_call.1} parent=51 // pred_fallthru
          _
        // Predicated region
        $region127: #{tpu_custom_call.1} parent=51 // pred_check
          %p1802 = pneg %p261
        $region128: #{tpu_custom_call.1} parent=51 // pred_check_branch
          %1804 = sbr.rel (%p1802) target = $region130
        $region129: #{tpu_custom_call.1} parent=51 // pred_region
          %s1806 = ssub.s32 128, 128
          %1807 = vsyncadd [#allocation11], %s1806
          %s1809 = sshll.u32 [#allocation12], 4
          %s1810 = int_to_ptr.vmem [resolvable:$true] %s1809
          %1812 = dma.vmem_to_hbm [thread:$0]  %s1810, 128, %s11, [#allocation11]
        $region130: #{tpu_custom_call.1} parent=51 // pred_fallthru
          _
        // Predicated region
        $region131: #{tpu_custom_call.1} parent=51 // pred_check
          %p1813 = pneg %p261
        $region132: #{tpu_custom_call.1} parent=51 // pred_check_branch
          %1815 = sbr.rel (%p1813) target = $region134
        $region133: #{tpu_custom_call.1} parent=51 // pred_region
          %1816 = dma.done [#allocation11], 128
        $region134: #{tpu_custom_call.1} parent=51 // pred_fallthru
          _
      $region52: #{tpu_custom_call.1} parent=5 // pred_fallthru
        _
      %p1817 = scmp.le.s32.totalorder 2, %s21
      // Predicated region
      $region135: #{tpu_custom_call.1} parent=5 // pred_check
        %p1818 = pneg %p1817
      $region136: #{tpu_custom_call.1} parent=5 // pred_check_branch
        %1820 = sbr.rel (%p1818) target = $region138
      $region137: #{tpu_custom_call.1} parent=5 // pred_region
        %s1821 = ssub.s32 %s21, 2
      $region138: #{tpu_custom_call.1} parent=5 // pred_fallthru
        _
    $region6: #{tpu_custom_call.1} parent=1 // loop_footer
      %s25 = sadd.s32 1, %s21
    $region7: #{tpu_custom_call.1} parent=1 // loop_footer_branch
      %20 = sbr.rel target = $region3
    $region8: #{tpu_custom_call.1} parent=1 // loop_exit
      _
    %1822 = vsyncpa [#allocation10], 1
    %s1823 = scalar_lea.sflag [#allocation10], 1
    %1824 = vsyncpa %s1823, 1
    %1825 = vsyncpa [#allocation11], 1
    %s1826 = scalar_lea.sflag [#allocation11], 1
    %1827 = vsyncpa %s1826, 1
  %1828 = vsyncmov [#allocation8]
  %s1829 = vpop.sfrf %1828
  %p1830 = scmp.eq.s32.totalorder %s1829, 0
  %p1831 = pneg %p1830
  %1833 = shalt.err (%p1831)
  %s1834 = scalar_lea.sflag [#allocation8], 1
  %1835 = vsyncmov %s1834
  %s1836 = vpop.sfrf %1835
  %p1837 = scmp.eq.s32.totalorder %s1836, 0
  %p1838 = pneg %p1837
  %1840 = shalt.err (%p1838)
  %s1841 = scalar_lea.sflag [#allocation8], 2
  %1842 = vsyncmov %s1841
  %s1843 = vpop.sfrf %1842
  %p1844 = scmp.eq.s32.totalorder %s1843, 0
  %p1845 = pneg %p1844
  %1847 = shalt.err (%p1845)

</llo_original>
